<compile_context>
chip_gen: v5e
topology: v5e:2x2
jax: 0.10.0
libtpu: 0.0.40
codegen_flags: <defaults>
</compile_context>

<pallas_src>
import functools
import math

import numpy as np
import jax
import jax.numpy as jnp
from jax import lax
from jax.experimental import pallas as pl
from jax.experimental.pallas import tpu as pltpu

HEAD_PAD = 128   # lane-dense width for the fused tagging-head output


# ------------------------------ kernel -------------------------------------- #

def _layernorm(x, gamma, beta, eps):
    mu = jnp.mean(x, axis=-1, keepdims=True)
    var = jnp.mean((x - mu) ** 2, axis=-1, keepdims=True)
    return (x - mu) * lax.rsqrt(var + eps) * gamma + beta


def _ct_layer_kernel(
        word_ref, pos_ref, mask_ref, eg_ref, eb_ref,
        wqkv_ref, bqkv_ref, w1_ref, b1_ref, w2_ref, b2_ref,
        g1_ref, be1_ref, g2_ref, be2_ref,
        wt_ref, bt_ref,
        out_ref, x_sc,
        *, num_layers, num_heads, head_dim, l_n, eps):
    """One (batch_row, layer) grid step of the CT transformer."""
    l = pl.program_id(1)
    S, D = x_sc.shape
    H, hd = num_heads, head_dim

    inv_sqrt_d = jnp.float32(1.0 / math.sqrt(head_dim))
    inv_sqrt2 = jnp.float32(1.0 / math.sqrt(2.0))
    neg_big = jnp.float32(-1e20)

    # ---- embeddings (only at the first layer of each batch row) -----------
    @pl.when(l == 0)
    def _():
        x0 = word_ref[0] + pos_ref[0]                               # (S, D)
        x_sc[...] = _layernorm(x0, eg_ref[...], eb_ref[...], eps)

    x = x_sc[...]                                                   # (S, D) f32

    # ---- masks built in-kernel from iota (no (L,S,S) HBM input) -----------
    mfl = jnp.where(l == num_layers - 1, jnp.int32(l_n), jnp.int32(0))
    row = lax.broadcasted_iota(jnp.int32, (S, S), 0)
    col = lax.broadcasted_iota(jnp.int32, (S, S), 1)
    mask_row = mask_ref[0]                                          # (1, S), 0 => masked
    allowed = jnp.logical_and(col <= row + mfl, mask_row != 0.0)    # (S, S)

    # ---- fused QKV projection: bf16 operands, f32 accumulation ------------
    x_bf = x.astype(jnp.bfloat16)
    qkv = jnp.dot(x_bf, wqkv_ref[0],
                  preferred_element_type=jnp.float32) + bqkv_ref[0]  # (S, 3D) f32

    def split_heads(t):                          # (S, D) -> (H, S, hd)
        return jnp.transpose(t.reshape(S, H, hd), (1, 0, 2))

    q = split_heads(qkv[:, :D]).astype(jnp.bfloat16)
    k = split_heads(qkv[:, D:2 * D]).astype(jnp.bfloat16)
    v = split_heads(qkv[:, 2 * D:]).astype(jnp.bfloat16)

    # ---- attention (head-batched, f32 softmax) -----------------------------
    s = jnp.einsum('hqd,hkd->hqk', q, k,
                   preferred_element_type=jnp.float32)               # (H, S, S)
    # masked_fill(-1e20) happens BEFORE the 1/sqrt(d) scale (as in PyTorch)
    s = jnp.where(allowed[None, :, :], s, neg_big) * inv_sqrt_d
    m = jnp.max(s, axis=-1, keepdims=True)
    e = jnp.exp(s - m)
    p = e * pl.reciprocal(jnp.sum(e, axis=-1, keepdims=True), approx=True)
    ctx_h = jnp.einsum('hqk,hkd->hqd', p.astype(jnp.bfloat16), v,
                       preferred_element_type=jnp.float32)           # (H, S, hd)
    # Reassemble heads in registers (no masked-store scatter loop).
    ctx = jnp.transpose(ctx_h, (1, 0, 2)).reshape(S, D)              # (S, D)

    # ---- residual + LayerNorm 1 (f32) --------------------------------------
    x1 = _layernorm(x + ctx, g1_ref[0], be1_ref[0], eps)

    # ---- feed-forward (bf16 matmuls, exact erf GELU in f32) ----------------
    h1 = jnp.dot(x1.astype(jnp.bfloat16), w1_ref[0],
                 preferred_element_type=jnp.float32) + b1_ref[0]
    h1 = 0.5 * h1 * (1.0 + lax.erf(h1 * inv_sqrt2))
    ff = jnp.dot(h1.astype(jnp.bfloat16), w2_ref[0],
                 preferred_element_type=jnp.float32) + b2_ref[0]

    # ---- residual + LayerNorm 2 (f32) --------------------------------------
    x2 = _layernorm(x1 + ff, g2_ref[0], be2_ref[0], eps)
    x_sc[...] = x2

    # ---- fused tagging heads (lane-dense, 128-wide padded output) ----------
    @pl.when(l == num_layers - 1)
    def _():
        logits = jnp.dot(x2.astype(jnp.bfloat16), wt_ref[...],
                         preferred_element_type=jnp.float32) + bt_ref[...]
        out_ref[0] = logits


# ------------------------------ wrapper ------------------------------------- #

def fused_forward(word_x, pos, mask3, params, cfg):
    B, S, D = word_x.shape
    L = cfg["num_hidden_layers"]
    H = cfg["num_attention_heads"]
    hd = D // H
    I = cfg["intermediate_size"]

    in_specs = [
        pl.BlockSpec((1, S, D), lambda b, l: (b, 0, 0)),        # word embeddings (row)
        pl.BlockSpec((1, S, D), lambda b, l: (0, 0, 0)),        # position table
        pl.BlockSpec((1, 1, S), lambda b, l: (b, 0, 0)),        # attention mask (row)
        pl.BlockSpec((1, D), lambda b, l: (0, 0)),              # embedding LN gamma
        pl.BlockSpec((1, D), lambda b, l: (0, 0)),              # embedding LN beta
        pl.BlockSpec((1, D, 3 * D), lambda b, l: (l, 0, 0)),    # fused Wqkv (bf16)
        pl.BlockSpec((1, 1, 3 * D), lambda b, l: (l, 0, 0)),    # fused bqkv
        pl.BlockSpec((1, D, I), lambda b, l: (l, 0, 0)),        # W1 (bf16)
        pl.BlockSpec((1, 1, I), lambda b, l: (l, 0, 0)),        # b1
        pl.BlockSpec((1, I, D), lambda b, l: (l, 0, 0)),        # W2 (bf16)
        pl.BlockSpec((1, 1, D), lambda b, l: (l, 0, 0)),        # b2
        pl.BlockSpec((1, 1, D), lambda b, l: (l, 0, 0)),        # LN1 gamma
        pl.BlockSpec((1, 1, D), lambda b, l: (l, 0, 0)),        # LN1 beta
        pl.BlockSpec((1, 1, D), lambda b, l: (l, 0, 0)),        # LN2 gamma
        pl.BlockSpec((1, 1, D), lambda b, l: (l, 0, 0)),        # LN2 beta
        pl.BlockSpec((D, HEAD_PAD), lambda b, l: (0, 0)),       # fused tagging head W (bf16)
        pl.BlockSpec((1, HEAD_PAD), lambda b, l: (0, 0)),       # fused tagging head b
    ]

    kernel = functools.partial(
        _ct_layer_kernel, num_layers=L, num_heads=H, head_dim=hd,
        l_n=cfg["L_N"], eps=cfg["layer_norm_eps"])

    return pl.pallas_call(
        kernel,
        out_shape=jax.ShapeDtypeStruct((B, S, HEAD_PAD), jnp.float32),
        grid=(B, L),
        in_specs=in_specs,
        out_specs=pl.BlockSpec((1, S, HEAD_PAD), lambda b, l: (b, 0, 0)),
        scratch_shapes=[pltpu.VMEM((S, D), jnp.float32)],       # hidden state across layers
        compiler_params=pltpu.CompilerParams(
            dimension_semantics=("parallel", "arbitrary"),
            vmem_limit_bytes=32 * 1024 * 1024),
    )(word_x, pos, mask3,
      params["emb_ln_g"], params["emb_ln_b"],
      params["wqkv"], params["bqkv"],
      params["w1"], params["b1"], params["w2"], params["b2"],
      params["ln1_g"], params["ln1_b"], params["ln2_g"], params["ln2_b"],
      params["wt"], params["bt"])


# ------------------------------ model glue ----------------------------------- #

def sinusoid_table(n_position, d_hid):
    pos = np.arange(n_position)[:, None].astype(np.float64)
    hid = np.arange(d_hid)[None, :]
    angle = pos / np.power(10000.0, 2 * (hid // 2) / d_hid)
    table = angle.copy()
    table[:, 0::2] = np.sin(angle[:, 0::2])
    table[:, 1::2] = np.cos(angle[:, 1::2])
    return jnp.asarray(table[None, ...], dtype=jnp.float32)   # (1, n_position, d_hid)


def init_params(key, cfg):
    D, I = cfg["d_model"], cfg["intermediate_size"]
    L = cfg["num_hidden_layers"]
    nd, np_ = cfg["num_disflu_labels"], cfg["num_punct_labels"]

    def norm(k, shape, scale=0.02):
        return scale * jax.random.normal(k, shape, dtype=jnp.float32)

    keys = iter(jax.random.split(key, 8 * L + 8))
    params = {}

    emb = norm(next(keys), (cfg["vocab_size"], D))
    params["word_emb"] = emb.at[cfg["pad_token_id"]].set(0.0)   # padding_idx row zero
    params["emb_ln_g"] = jnp.ones((1, D), jnp.float32)
    params["emb_ln_b"] = jnp.zeros((1, D), jnp.float32)

    # Fused QKV weights in input-major orientation: columns [0:D]=Q, [D:2D]=K, [2D:3D]=V.
    params["wqkv"] = jnp.stack(
        [jnp.concatenate([norm(next(keys), (D, D)) for _ in range(3)], axis=1)
         for _ in range(L)]).astype(jnp.bfloat16)                # (L, D, 3D)
    params["bqkv"] = jnp.zeros((L, 1, 3 * D), jnp.float32)

    params["w1"] = jnp.stack([norm(next(keys), (D, I)) for _ in range(L)]).astype(jnp.bfloat16)
    params["b1"] = jnp.zeros((L, 1, I), jnp.float32)
    params["w2"] = jnp.stack([norm(next(keys), (I, D)) for _ in range(L)]).astype(jnp.bfloat16)
    params["b2"] = jnp.zeros((L, 1, D), jnp.float32)
    params["ln1_g"] = jnp.ones((L, 1, D), jnp.float32)
    params["ln1_b"] = jnp.zeros((L, 1, D), jnp.float32)
    params["ln2_g"] = jnp.ones((L, 1, D), jnp.float32)
    params["ln2_b"] = jnp.zeros((L, 1, D), jnp.float32)

    # Fused + lane-padded tagging heads: columns [0:nd] = disfluency, [nd:nd+np_] = punct.
    wd = norm(next(keys), (D, nd))
    wp = norm(next(keys), (D, np_))
    wt = jnp.zeros((D, HEAD_PAD), jnp.float32)
    params["wt"] = wt.at[:, :nd].set(wd).at[:, nd:nd + np_].set(wp).astype(jnp.bfloat16)
    params["bt"] = jnp.zeros((1, HEAD_PAD), jnp.float32)

    params["pos_table"] = sinusoid_table(cfg["max_position_embeddings"], D)
    return params


def ct_transformer_for_pretraining(params, cfg, input_ids, attention_mask,
                                    disflu_labels=None, punct_labels=None):
    B, S = input_ids.shape
    nd, np_ = cfg["num_disflu_labels"], cfg["num_punct_labels"]

    # TODO(synk): embedding lookup (data-dependent gather) stays in XLA glue.
    word_x = jnp.take(params["word_emb"], input_ids, axis=0)       # (B, S, D)
    pos = params["pos_table"][:, :S]                               # (1, S, D)
    mask3 = attention_mask.astype(jnp.float32).reshape(B, 1, S)

    logits = fused_forward(word_x, pos, mask3, params, cfg)        # (B, S, 128)
    disflu_logits = logits[..., :nd]
    punct_logits = logits[..., nd:nd + np_]

    loss = None
    if disflu_labels is not None and punct_labels is not None:
        # TODO(synk): cross-entropy loss path kept in plain JAX (not a kernel hot path).
        def ce(lg, labels, n):
            logp = jax.nn.log_softmax(lg.reshape(-1, n), axis=-1)
            return -jnp.mean(jnp.take_along_axis(logp, labels.reshape(-1, 1), axis=-1))
        loss = (ce(disflu_logits, disflu_labels, nd) +
                ce(punct_logits, punct_labels, np_))

    return loss, disflu_logits, punct_logits


# ------------------------------ main ----------------------------------------- #

if __name__ == "__main__":
    cfg = dict(
        vocab_size=32,
        d_model=32,
        num_attention_heads=4,
        intermediate_size=64,
        max_position_embeddings=16,
        num_hidden_layers=2,
        L_N=2,
        num_disflu_labels=4,
        num_punct_labels=5,
        pad_token_id=0,
        layer_norm_eps=1e-12,
        hidden_dropout_prob=0.1,           # identity at inference
        attention_probs_dropout_prob=0.1,  # identity at inference
    )

    B, S = 2, 8
    key = jax.random.PRNGKey(0)
    k_param, k_ids = jax.random.split(key)

    params = init_params(k_param, cfg)
    input_ids = jax.random.randint(k_ids, (B, S), 1, cfg["vocab_size"], dtype=jnp.int32)
    attention_mask = jnp.ones((B, S), jnp.float32).at[1, S - 2:].set(0.0)

    fwd = jax.jit(lambda prm, ids, am: ct_transformer_for_pretraining(prm, cfg, ids, am))
    loss, disflu_logits, punct_logits = fwd(params, input_ids, attention_mask)

    jax.block_until_ready((disflu_logits, punct_logits))
    assert disflu_logits.shape == (B, S, cfg["num_disflu_labels"])
    assert punct_logits.shape == (B, S, cfg["num_punct_labels"])
    assert loss is None
    print("KERNEL_OK")
</pallas_src>

<mosaic_0001>
module attributes {stable_mosaic.version = 11 : i64} {
  func.func @_ct_layer_kernel(%arg0: i32, %arg1: i32, %arg2: memref<1x8x32xf32, #tpu.memory_space<vmem>>, %arg3: memref<1x8x32xf32, #tpu.memory_space<vmem>>, %arg4: memref<1x1x8xf32, #tpu.memory_space<vmem>>, %arg5: memref<1x32xf32, #tpu.memory_space<vmem>>, %arg6: memref<1x32xf32, #tpu.memory_space<vmem>>, %arg7: memref<1x32x96xbf16, #tpu.memory_space<vmem>>, %arg8: memref<1x1x96xf32, #tpu.memory_space<vmem>>, %arg9: memref<1x32x64xbf16, #tpu.memory_space<vmem>>, %arg10: memref<1x1x64xf32, #tpu.memory_space<vmem>>, %arg11: memref<1x64x32xbf16, #tpu.memory_space<vmem>>, %arg12: memref<1x1x32xf32, #tpu.memory_space<vmem>>, %arg13: memref<1x1x32xf32, #tpu.memory_space<vmem>>, %arg14: memref<1x1x32xf32, #tpu.memory_space<vmem>>, %arg15: memref<1x1x32xf32, #tpu.memory_space<vmem>>, %arg16: memref<1x1x32xf32, #tpu.memory_space<vmem>>, %arg17: memref<32x128xbf16, #tpu.memory_space<vmem>>, %arg18: memref<1x128xf32, #tpu.memory_space<vmem>>, %arg19: memref<1x8x128xf32, #tpu.memory_space<vmem>>, %arg20: memref<8x32xf32, #tpu.memory_space<vmem>>) attributes {dimension_semantics = [#tpu.dimension_semantics<parallel>, #tpu.dimension_semantics<arbitrary>], iteration_bounds = array<i64: 2, 2>, scalar_prefetch = 0 : i64, scratch_operands = 1 : i64, tpu.core_type = #tpu.core_type<tc>, window_params = [{transform_indices = @transform_0, window_bounds = array<i64: 1, 8, 32>}, {pipeline_mode = #tpu.pipeline_mode<synchronous>, transform_indices = @transform_1, window_bounds = array<i64: 1, 8, 32>}, {transform_indices = @transform_2, window_bounds = array<i64: 1, 1, 8>}, {pipeline_mode = #tpu.pipeline_mode<synchronous>, transform_indices = @transform_3, window_bounds = array<i64: 1, 32>}, {pipeline_mode = #tpu.pipeline_mode<synchronous>, transform_indices = @transform_4, window_bounds = array<i64: 1, 32>}, {transform_indices = @transform_5, window_bounds = array<i64: 1, 32, 96>}, {transform_indices = @transform_6, window_bounds = array<i64: 1, 1, 96>}, {transform_indices = @transform_7, window_bounds = array<i64: 1, 32, 64>}, {transform_indices = @transform_8, window_bounds = array<i64: 1, 1, 64>}, {transform_indices = @transform_9, window_bounds = array<i64: 1, 64, 32>}, {transform_indices = @transform_10, window_bounds = array<i64: 1, 1, 32>}, {transform_indices = @transform_11, window_bounds = array<i64: 1, 1, 32>}, {transform_indices = @transform_12, window_bounds = array<i64: 1, 1, 32>}, {transform_indices = @transform_13, window_bounds = array<i64: 1, 1, 32>}, {transform_indices = @transform_14, window_bounds = array<i64: 1, 1, 32>}, {pipeline_mode = #tpu.pipeline_mode<synchronous>, transform_indices = @transform_15, window_bounds = array<i64: 32, 128>}, {pipeline_mode = #tpu.pipeline_mode<synchronous>, transform_indices = @transform_16, window_bounds = array<i64: 1, 128>}, {transform_indices = @transform_17, window_bounds = array<i64: 1, 8, 128>}]} {
    %c0_i32 = arith.constant 0 : i32
    %0 = arith.cmpi eq, %arg1, %c0_i32 : i32
    %1 = arith.extui %0 : i1 to i32
    %c0_i32_0 = arith.constant 0 : i32
    %2 = arith.cmpi ne, %1, %c0_i32_0 : i32
    scf.if %2 {
      %c0_62 = arith.constant 0 : index
      %c0_63 = arith.constant 0 : index
      %c0_64 = arith.constant 0 : index
      %141 = vector.load %arg2[%c0_62, %c0_63, %c0_64] : memref<1x8x32xf32, #tpu.memory_space<vmem>>, vector<1x8x32xf32>
      %142 = vector.shape_cast %141 : vector<1x8x32xf32> to vector<8x32xf32>
      %c0_65 = arith.constant 0 : index
      %c0_66 = arith.constant 0 : index
      %c0_67 = arith.constant 0 : index
      %143 = vector.load %arg3[%c0_65, %c0_66, %c0_67] : memref<1x8x32xf32, #tpu.memory_space<vmem>>, vector<1x8x32xf32>
      %144 = vector.shape_cast %143 : vector<1x8x32xf32> to vector<8x32xf32>
      %145 = arith.addf %142, %144 : vector<8x32xf32>
      %c0_68 = arith.constant 0 : index
      %c0_69 = arith.constant 0 : index
      %146 = vector.load %arg5[%c0_68, %c0_69] : memref<1x32xf32, #tpu.memory_space<vmem>>, vector<1x32xf32>
      %c0_70 = arith.constant 0 : index
      %c0_71 = arith.constant 0 : index
      %147 = vector.load %arg6[%c0_70, %c0_71] : memref<1x32xf32, #tpu.memory_space<vmem>>, vector<1x32xf32>
      %cst_72 = arith.constant dense<0.000000e+00> : vector<8xf32>
      %148 = vector.multi_reduction <add>, %145, %cst_72 [1] : vector<8x32xf32> to vector<8xf32>
      %149 = vector.shape_cast %148 : vector<8xf32> to vector<8x1xf32>
      %cst_73 = arith.constant 3.200000e+01 : f32
      %150 = vector.broadcast %cst_73 : f32 to vector<8x1xf32>
      %151 = arith.divf %149, %150 : vector<8x1xf32>
      %152 = vector.broadcast %151 : vector<8x1xf32> to vector<8x32xf32>
      %153 = arith.subf %145, %152 : vector<8x32xf32>
      %154 = arith.mulf %153, %153 : vector<8x32xf32>
      %cst_74 = arith.constant dense<0.000000e+00> : vector<8xf32>
      %155 = vector.multi_reduction <add>, %154, %cst_74 [1] : vector<8x32xf32> to vector<8xf32>
      %156 = vector.shape_cast %155 : vector<8xf32> to vector<8x1xf32>
      %cst_75 = arith.constant 3.200000e+01 : f32
      %157 = vector.broadcast %cst_75 : f32 to vector<8x1xf32>
      %158 = arith.divf %156, %157 : vector<8x1xf32>
      %159 = vector.broadcast %151 : vector<8x1xf32> to vector<8x32xf32>
      %160 = arith.subf %145, %159 : vector<8x32xf32>
      %cst_76 = arith.constant 9.99999996E-13 : f32
      %161 = vector.broadcast %cst_76 : f32 to vector<8x1xf32>
      %162 = arith.addf %158, %161 : vector<8x1xf32>
      %163 = math.rsqrt %162 : vector<8x1xf32>
      %164 = vector.broadcast %163 : vector<8x1xf32> to vector<8x32xf32>
      %165 = arith.mulf %160, %164 : vector<8x32xf32>
      %166 = vector.broadcast %146 : vector<1x32xf32> to vector<8x32xf32>
      %167 = arith.mulf %165, %166 : vector<8x32xf32>
      %168 = vector.broadcast %147 : vector<1x32xf32> to vector<8x32xf32>
      %169 = arith.addf %167, %168 : vector<8x32xf32>
      %c0_77 = arith.constant 0 : index
      %c0_78 = arith.constant 0 : index
      %170 = vector.load %arg20[%c0_77, %c0_78] : memref<8x32xf32, #tpu.memory_space<vmem>>, vector<8x32xf32>
      tpu.vector_store %arg20[%c0_77, %c0_78], %169 {strides = array<i32>} : memref<8x32xf32, #tpu.memory_space<vmem>>, vector<8x32xf32>,
    } else {
    }
    %c0 = arith.constant 0 : index
    %c0_1 = arith.constant 0 : index
    %3 = vector.load %arg20[%c0, %c0_1] : memref<8x32xf32, #tpu.memory_space<vmem>>, vector<8x32xf32>
    %c1_i32 = arith.constant 1 : i32
    %4 = arith.cmpi eq, %arg1, %c1_i32 : i32
    %c2_i32 = arith.constant 2 : i32
    %c0_i32_2 = arith.constant 0 : i32
    %5 = arith.select %4, %c2_i32, %c0_i32_2 : i32
    %6 = tpu.iota {dimensions = array<i32: 0>} : vector<8x8xi32>
    %7 = tpu.iota {dimensions = array<i32: 1>} : vector<8x8xi32>
    %c0_3 = arith.constant 0 : index
    %c0_4 = arith.constant 0 : index
    %c0_5 = arith.constant 0 : index
    %8 = vector.load %arg4[%c0_3, %c0_4, %c0_5] : memref<1x1x8xf32, #tpu.memory_space<vmem>>, vector<1x1x8xf32>
    %9 = vector.shape_cast %8 : vector<1x1x8xf32> to vector<1x8xf32>
    %10 = vector.broadcast %5 : i32 to vector<8x8xi32>
    %11 = arith.addi %6, %10 : vector<8x8xi32>
    %12 = arith.cmpi sle, %7, %11 : vector<8x8xi32>
    %cst = arith.constant 0.000000e+00 : f32
    %13 = vector.broadcast %cst : f32 to vector<1x8xf32>
    %14 = arith.cmpf one, %9, %13 : vector<1x8xf32>
    %15 = vector.broadcast %14 : vector<1x8xi1> to vector<8x8xi1>
    %16 = arith.andi %12, %15 : vector<8x8xi1>
    %17 = arith.truncf %3 : vector<8x32xf32> to vector<8x32xbf16>
    %c0_6 = arith.constant 0 : index
    %c0_7 = arith.constant 0 : index
    %c0_8 = arith.constant 0 : index
    %18 = vector.load %arg7[%c0_6, %c0_7, %c0_8] : memref<1x32x96xbf16, #tpu.memory_space<vmem>>, vector<1x32x96xbf16>
    %19 = vector.shape_cast %18 : vector<1x32x96xbf16> to vector<32x96xbf16>
    %cst_9 = arith.constant dense<0.000000e+00> : vector<8x96xf32>
    %20 = tpu.matmul %17, %19, %cst_9 {dimension_numbers = #tpu.dot_dimension_numbers<[1], [0], [0], [1], [0, 0, 1, 1], [], []>} : vector<8x32xbf16>, vector<32x96xbf16>, vector<8x96xf32> -> vector<8x96xf32>
    %c0_10 = arith.constant 0 : index
    %c0_11 = arith.constant 0 : index
    %c0_12 = arith.constant 0 : index
    %21 = vector.load %arg8[%c0_10, %c0_11, %c0_12] : memref<1x1x96xf32, #tpu.memory_space<vmem>>, vector<1x1x96xf32>
    %22 = vector.shape_cast %21 : vector<1x1x96xf32> to vector<1x96xf32>
    %23 = vector.broadcast %22 : vector<1x96xf32> to vector<8x96xf32>
    %24 = arith.addf %20, %23 : vector<8x96xf32>
    %25 = vector.extract_strided_slice %24 {offsets = [0, 0], sizes = [8, 32], strides = [1, 1]} : vector<8x96xf32> to vector<8x32xf32>
    %26 = vector.shape_cast %25 : vector<8x32xf32> to vector<8x4x8xf32>
    %27 = tpu.transpose %26, [1, 0, 2] : vector<8x4x8xf32> -> vector<4x8x8xf32>
    %28 = arith.truncf %27 : vector<4x8x8xf32> to vector<4x8x8xbf16>
    %29 = vector.extract_strided_slice %24 {offsets = [0, 32], sizes = [8, 32], strides = [1, 1]} : vector<8x96xf32> to vector<8x32xf32>
    %30 = vector.shape_cast %29 : vector<8x32xf32> to vector<8x4x8xf32>
    %31 = tpu.transpose %30, [1, 0, 2] : vector<8x4x8xf32> -> vector<4x8x8xf32>
    %32 = arith.truncf %31 : vector<4x8x8xf32> to vector<4x8x8xbf16>
    %33 = vector.extract_strided_slice %24 {offsets = [0, 64], sizes = [8, 32], strides = [1, 1]} : vector<8x96xf32> to vector<8x32xf32>
    %34 = vector.shape_cast %33 : vector<8x32xf32> to vector<8x4x8xf32>
    %35 = tpu.transpose %34, [1, 0, 2] : vector<8x4x8xf32> -> vector<4x8x8xf32>
    %36 = arith.truncf %35 : vector<4x8x8xf32> to vector<4x8x8xbf16>
    "tpu.trace_start"() <{level = 10 : i32, message = "hqd,hkd->hqk"}> : () -> ()
    %cst_13 = arith.constant dense<0.000000e+00> : vector<4x8x8xf32>
    %37 = tpu.matmul %28, %32, %cst_13 {dimension_numbers = #tpu.dot_dimension_numbers<[2], [2], [1], [1], [0, 0, 0, 1, 1, 1], [0], [0]>} : vector<4x8x8xbf16>, vector<4x8x8xbf16>, vector<4x8x8xf32> -> vector<4x8x8xf32>
    "tpu.trace_stop"() : () -> ()
    %38 = vector.shape_cast %16 : vector<8x8xi1> to vector<1x8x8xi1>
    %cst_14 = arith.constant -1.000000e+20 : f32
    %39 = vector.shape_cast %38 : vector<1x8x8xi1> to vector<1x8x8xi1>
    %40 = vector.broadcast %39 : vector<1x8x8xi1> to vector<4x8x8xi1>
    %41 = vector.broadcast %cst_14 : f32 to vector<4x8x8xf32>
    %42 = arith.select %40, %37, %41 : vector<4x8x8xi1>, vector<4x8x8xf32>
    %cst_15 = arith.constant 0.353553385 : f32
    %43 = vector.broadcast %cst_15 : f32 to vector<4x8x8xf32>
    %44 = arith.mulf %42, %43 : vector<4x8x8xf32>
    %cst_16 = arith.constant dense<0xFF800000> : vector<4x8xf32>
    %45 = vector.multi_reduction <maximumf>, %44, %cst_16 [2] : vector<4x8x8xf32> to vector<4x8xf32>
    %46 = vector.shape_cast %45 : vector<4x8xf32> to vector<4x8x1xf32>
    %47 = vector.broadcast %46 : vector<4x8x1xf32> to vector<4x8x8xf32>
    %48 = arith.subf %44, %47 : vector<4x8x8xf32>
    %49 = math.exp %48 : vector<4x8x8xf32>
    %cst_17 = arith.constant dense<0.000000e+00> : vector<4x8xf32>
    %50 = vector.multi_reduction <add>, %49, %cst_17 [2] : vector<4x8x8xf32> to vector<4x8xf32>
    %51 = vector.shape_cast %50 : vector<4x8xf32> to vector<4x8x1xf32>
    %52 = tpu.reciprocal %51 {approx = true} : vector<4x8x1xf32> -> vector<4x8x1xf32>
    %53 = vector.broadcast %52 : vector<4x8x1xf32> to vector<4x8x8xf32>
    %54 = arith.mulf %49, %53 : vector<4x8x8xf32>
    %55 = arith.truncf %54 : vector<4x8x8xf32> to vector<4x8x8xbf16>
    "tpu.trace_start"() <{level = 10 : i32, message = "hqk,hkd->hqd"}> : () -> ()
    %cst_18 = arith.constant dense<0.000000e+00> : vector<4x8x8xf32>
    %56 = tpu.matmul %55, %36, %cst_18 {dimension_numbers = #tpu.dot_dimension_numbers<[2], [1], [1], [2], [0, 0, 0, 1, 1, 2], [0], [0]>} : vector<4x8x8xbf16>, vector<4x8x8xbf16>, vector<4x8x8xf32> -> vector<4x8x8xf32>
    "tpu.trace_stop"() : () -> ()
    %57 = tpu.transpose %56, [1, 0, 2] : vector<4x8x8xf32> -> vector<8x4x8xf32>
    %58 = vector.shape_cast %57 : vector<8x4x8xf32> to vector<8x32xf32>
    %59 = arith.addf %3, %58 : vector<8x32xf32>
    %c0_19 = arith.constant 0 : index
    %c0_20 = arith.constant 0 : index
    %c0_21 = arith.constant 0 : index
    %60 = vector.load %arg13[%c0_19, %c0_20, %c0_21] : memref<1x1x32xf32, #tpu.memory_space<vmem>>, vector<1x1x32xf32>
    %61 = vector.shape_cast %60 : vector<1x1x32xf32> to vector<1x32xf32>
    %c0_22 = arith.constant 0 : index
    %c0_23 = arith.constant 0 : index
    %c0_24 = arith.constant 0 : index
    %62 = vector.load %arg14[%c0_22, %c0_23, %c0_24] : memref<1x1x32xf32, #tpu.memory_space<vmem>>, vector<1x1x32xf32>
    %63 = vector.shape_cast %62 : vector<1x1x32xf32> to vector<1x32xf32>
    %cst_25 = arith.constant dense<0.000000e+00> : vector<8xf32>
    %64 = vector.multi_reduction <add>, %59, %cst_25 [1] : vector<8x32xf32> to vector<8xf32>
    %65 = vector.shape_cast %64 : vector<8xf32> to vector<8x1xf32>
    %cst_26 = arith.constant 3.200000e+01 : f32
    %66 = vector.broadcast %cst_26 : f32 to vector<8x1xf32>
    %67 = arith.divf %65, %66 : vector<8x1xf32>
    %68 = vector.broadcast %67 : vector<8x1xf32> to vector<8x32xf32>
    %69 = arith.subf %59, %68 : vector<8x32xf32>
    %70 = arith.mulf %69, %69 : vector<8x32xf32>
    %cst_27 = arith.constant dense<0.000000e+00> : vector<8xf32>
    %71 = vector.multi_reduction <add>, %70, %cst_27 [1] : vector<8x32xf32> to vector<8xf32>
    %72 = vector.shape_cast %71 : vector<8xf32> to vector<8x1xf32>
    %cst_28 = arith.constant 3.200000e+01 : f32
    %73 = vector.broadcast %cst_28 : f32 to vector<8x1xf32>
    %74 = arith.divf %72, %73 : vector<8x1xf32>
    %75 = vector.broadcast %67 : vector<8x1xf32> to vector<8x32xf32>
    %76 = arith.subf %59, %75 : vector<8x32xf32>
    %cst_29 = arith.constant 9.99999996E-13 : f32
    %77 = vector.broadcast %cst_29 : f32 to vector<8x1xf32>
    %78 = arith.addf %74, %77 : vector<8x1xf32>
    %79 = math.rsqrt %78 : vector<8x1xf32>
    %80 = vector.broadcast %79 : vector<8x1xf32> to vector<8x32xf32>
    %81 = arith.mulf %76, %80 : vector<8x32xf32>
    %82 = vector.broadcast %61 : vector<1x32xf32> to vector<8x32xf32>
    %83 = arith.mulf %81, %82 : vector<8x32xf32>
    %84 = vector.broadcast %63 : vector<1x32xf32> to vector<8x32xf32>
    %85 = arith.addf %83, %84 : vector<8x32xf32>
    %86 = arith.truncf %85 : vector<8x32xf32> to vector<8x32xbf16>
    %c0_30 = arith.constant 0 : index
    %c0_31 = arith.constant 0 : index
    %c0_32 = arith.constant 0 : index
    %87 = vector.load %arg9[%c0_30, %c0_31, %c0_32] : memref<1x32x64xbf16, #tpu.memory_space<vmem>>, vector<1x32x64xbf16>
    %88 = vector.shape_cast %87 : vector<1x32x64xbf16> to vector<32x64xbf16>
    %cst_33 = arith.constant dense<0.000000e+00> : vector<8x64xf32>
    %89 = tpu.matmul %86, %88, %cst_33 {dimension_numbers = #tpu.dot_dimension_numbers<[1], [0], [0], [1], [0, 0, 1, 1], [], []>} : vector<8x32xbf16>, vector<32x64xbf16>, vector<8x64xf32> -> vector<8x64xf32>
    %c0_34 = arith.constant 0 : index
    %c0_35 = arith.constant 0 : index
    %c0_36 = arith.constant 0 : index
    %90 = vector.load %arg10[%c0_34, %c0_35, %c0_36] : memref<1x1x64xf32, #tpu.memory_space<vmem>>, vector<1x1x64xf32>
    %91 = vector.shape_cast %90 : vector<1x1x64xf32> to vector<1x64xf32>
    %92 = vector.broadcast %91 : vector<1x64xf32> to vector<8x64xf32>
    %93 = arith.addf %89, %92 : vector<8x64xf32>
    %cst_37 = arith.constant 5.000000e-01 : f32
    %94 = vector.broadcast %cst_37 : f32 to vector<8x64xf32>
    %95 = arith.mulf %94, %93 : vector<8x64xf32>
    %cst_38 = arith.constant 0.707106769 : f32
    %96 = vector.broadcast %cst_38 : f32 to vector<8x64xf32>
    %97 = arith.mulf %93, %96 : vector<8x64xf32>
    %98 = math.erf %97 : vector<8x64xf32>
    %cst_39 = arith.constant 1.000000e+00 : f32
    %99 = vector.broadcast %cst_39 : f32 to vector<8x64xf32>
    %100 = arith.addf %99, %98 : vector<8x64xf32>
    %101 = arith.mulf %95, %100 : vector<8x64xf32>
    %102 = arith.truncf %101 : vector<8x64xf32> to vector<8x64xbf16>
    %c0_40 = arith.constant 0 : index
    %c0_41 = arith.constant 0 : index
    %c0_42 = arith.constant 0 : index
    %103 = vector.load %arg11[%c0_40, %c0_41, %c0_42] : memref<1x64x32xbf16, #tpu.memory_space<vmem>>, vector<1x64x32xbf16>
    %104 = vector.shape_cast %103 : vector<1x64x32xbf16> to vector<64x32xbf16>
    %cst_43 = arith.constant dense<0.000000e+00> : vector<8x32xf32>
    %105 = tpu.matmul %102, %104, %cst_43 {dimension_numbers = #tpu.dot_dimension_numbers<[1], [0], [0], [1], [0, 0, 1, 1], [], []>} : vector<8x64xbf16>, vector<64x32xbf16>, vector<8x32xf32> -> vector<8x32xf32>
    %c0_44 = arith.constant 0 : index
    %c0_45 = arith.constant 0 : index
    %c0_46 = arith.constant 0 : index
    %106 = vector.load %arg12[%c0_44, %c0_45, %c0_46] : memref<1x1x32xf32, #tpu.memory_space<vmem>>, vector<1x1x32xf32>
    %107 = vector.shape_cast %106 : vector<1x1x32xf32> to vector<1x32xf32>
    %108 = vector.broadcast %107 : vector<1x32xf32> to vector<8x32xf32>
    %109 = arith.addf %105, %108 : vector<8x32xf32>
    %110 = arith.addf %85, %109 : vector<8x32xf32>
    %c0_47 = arith.constant 0 : index
    %c0_48 = arith.constant 0 : index
    %c0_49 = arith.constant 0 : index
    %111 = vector.load %arg15[%c0_47, %c0_48, %c0_49] : memref<1x1x32xf32, #tpu.memory_space<vmem>>, vector<1x1x32xf32>
    %112 = vector.shape_cast %111 : vector<1x1x32xf32> to vector<1x32xf32>
    %c0_50 = arith.constant 0 : index
    %c0_51 = arith.constant 0 : index
    %c0_52 = arith.constant 0 : index
    %113 = vector.load %arg16[%c0_50, %c0_51, %c0_52] : memref<1x1x32xf32, #tpu.memory_space<vmem>>, vector<1x1x32xf32>
    %114 = vector.shape_cast %113 : vector<1x1x32xf32> to vector<1x32xf32>
    %cst_53 = arith.constant dense<0.000000e+00> : vector<8xf32>
    %115 = vector.multi_reduction <add>, %110, %cst_53 [1] : vector<8x32xf32> to vector<8xf32>
    %116 = vector.shape_cast %115 : vector<8xf32> to vector<8x1xf32>
    %cst_54 = arith.constant 3.200000e+01 : f32
    %117 = vector.broadcast %cst_54 : f32 to vector<8x1xf32>
    %118 = arith.divf %116, %117 : vector<8x1xf32>
    %119 = vector.broadcast %118 : vector<8x1xf32> to vector<8x32xf32>
    %120 = arith.subf %110, %119 : vector<8x32xf32>
    %121 = arith.mulf %120, %120 : vector<8x32xf32>
    %cst_55 = arith.constant dense<0.000000e+00> : vector<8xf32>
    %122 = vector.multi_reduction <add>, %121, %cst_55 [1] : vector<8x32xf32> to vector<8xf32>
    %123 = vector.shape_cast %122 : vector<8xf32> to vector<8x1xf32>
    %cst_56 = arith.constant 3.200000e+01 : f32
    %124 = vector.broadcast %cst_56 : f32 to vector<8x1xf32>
    %125 = arith.divf %123, %124 : vector<8x1xf32>
    %126 = vector.broadcast %118 : vector<8x1xf32> to vector<8x32xf32>
    %127 = arith.subf %110, %126 : vector<8x32xf32>
    %cst_57 = arith.constant 9.99999996E-13 : f32
    %128 = vector.broadcast %cst_57 : f32 to vector<8x1xf32>
    %129 = arith.addf %125, %128 : vector<8x1xf32>
    %130 = math.rsqrt %129 : vector<8x1xf32>
    %131 = vector.broadcast %130 : vector<8x1xf32> to vector<8x32xf32>
    %132 = arith.mulf %127, %131 : vector<8x32xf32>
    %133 = vector.broadcast %112 : vector<1x32xf32> to vector<8x32xf32>
    %134 = arith.mulf %132, %133 : vector<8x32xf32>
    %135 = vector.broadcast %114 : vector<1x32xf32> to vector<8x32xf32>
    %136 = arith.addf %134, %135 : vector<8x32xf32>
    %c0_58 = arith.constant 0 : index
    %c0_59 = arith.constant 0 : index
    %137 = vector.load %arg20[%c0_58, %c0_59] : memref<8x32xf32, #tpu.memory_space<vmem>>, vector<8x32xf32>
    tpu.vector_store %arg20[%c0_58, %c0_59], %136 {strides = array<i32>} : memref<8x32xf32, #tpu.memory_space<vmem>>, vector<8x32xf32>,
    %c1_i32_60 = arith.constant 1 : i32
    %138 = arith.cmpi eq, %arg1, %c1_i32_60 : i32
    %139 = arith.extui %138 : i1 to i32
    %c0_i32_61 = arith.constant 0 : i32
    %140 = arith.cmpi ne, %139, %c0_i32_61 : i32
    scf.if %140 {
      %141 = arith.truncf %136 : vector<8x32xf32> to vector<8x32xbf16>
      %c0_62 = arith.constant 0 : index
      %c0_63 = arith.constant 0 : index
      %142 = vector.load %arg17[%c0_62, %c0_63] : memref<32x128xbf16, #tpu.memory_space<vmem>>, vector<32x128xbf16>
      %cst_64 = arith.constant dense<0.000000e+00> : vector<8x128xf32>
      %143 = tpu.matmul %141, %142, %cst_64 {dimension_numbers = #tpu.dot_dimension_numbers<[1], [0], [0], [1], [0, 0, 1, 1], [], []>} : vector<8x32xbf16>, vector<32x128xbf16>, vector<8x128xf32> -> vector<8x128xf32>
      %c0_65 = arith.constant 0 : index
      %c0_66 = arith.constant 0 : index
      %144 = vector.load %arg18[%c0_65, %c0_66] : memref<1x128xf32, #tpu.memory_space<vmem>>, vector<1x128xf32>
      %145 = vector.broadcast %144 : vector<1x128xf32> to vector<8x128xf32>
      %146 = arith.addf %143, %145 : vector<8x128xf32>
      %c0_67 = arith.constant 0 : index
      %c0_68 = arith.constant 0 : index
      %c0_69 = arith.constant 0 : index
      %147 = vector.load %arg19[%c0_67, %c0_68, %c0_69] : memref<1x8x128xf32, #tpu.memory_space<vmem>>, vector<1x8x128xf32>
      %148 = vector.shape_cast %147 : vector<1x8x128xf32> to vector<8x128xf32>
      %149 = vector.shape_cast %146 : vector<8x128xf32> to vector<1x8x128xf32>
      tpu.vector_store %arg19[%c0_67, %c0_68, %c0_69], %149 {strides = array<i32>} : memref<1x8x128xf32, #tpu.memory_space<vmem>>, vector<1x8x128xf32>,
    } else {
    }
    return
  }
  func.func @transform_0(%arg0: i32, %arg1: i32) -> (i32, i32, i32) {
    %c0_i32 = arith.constant 0 : i32
    %c0_i32_0 = arith.constant 0 : i32
    %c0_i32_1 = arith.constant 0 : i32
    return %arg0, %c0_i32, %c0_i32_0 : i32, i32, i32
  }
  func.func @transform_1(%arg0: i32, %arg1: i32) -> (i32, i32, i32) {
    %c0_i32 = arith.constant 0 : i32
    %c0_i32_0 = arith.constant 0 : i32
    %c0_i32_1 = arith.constant 0 : i32
    %c0_i32_2 = arith.constant 0 : i32
    return %c0_i32, %c0_i32_0, %c0_i32_1 : i32, i32, i32
  }
  func.func @transform_2(%arg0: i32, %arg1: i32) -> (i32, i32, i32) {
    %c0_i32 = arith.constant 0 : i32
    %c0_i32_0 = arith.constant 0 : i32
    %c0_i32_1 = arith.constant 0 : i32
    return %arg0, %c0_i32, %c0_i32_0 : i32, i32, i32
  }
  func.func @transform_3(%arg0: i32, %arg1: i32) -> (i32, i32) {
    %c0_i32 = arith.constant 0 : i32
    %c0_i32_0 = arith.constant 0 : i32
    %c0_i32_1 = arith.constant 0 : i32
    return %c0_i32, %c0_i32_0 : i32, i32
  }
  func.func @transform_4(%arg0: i32, %arg1: i32) -> (i32, i32) {
    %c0_i32 = arith.constant 0 : i32
    %c0_i32_0 = arith.constant 0 : i32
    %c0_i32_1 = arith.constant 0 : i32
    return %c0_i32, %c0_i32_0 : i32, i32
  }
  func.func @transform_5(%arg0: i32, %arg1: i32) -> (i32, i32, i32) {
    %c0_i32 = arith.constant 0 : i32
    %c0_i32_0 = arith.constant 0 : i32
    %c0_i32_1 = arith.constant 0 : i32
    return %arg1, %c0_i32, %c0_i32_0 : i32, i32, i32
  }
  func.func @transform_6(%arg0: i32, %arg1: i32) -> (i32, i32, i32) {
    %c0_i32 = arith.constant 0 : i32
    %c0_i32_0 = arith.constant 0 : i32
    %c0_i32_1 = arith.constant 0 : i32
    return %arg1, %c0_i32, %c0_i32_0 : i32, i32, i32
  }
  func.func @transform_7(%arg0: i32, %arg1: i32) -> (i32, i32, i32) {
    %c0_i32 = arith.constant 0 : i32
    %c0_i32_0 = arith.constant 0 : i32
    %c0_i32_1 = arith.constant 0 : i32
    return %arg1, %c0_i32, %c0_i32_0 : i32, i32, i32
  }
  func.func @transform_8(%arg0: i32, %arg1: i32) -> (i32, i32, i32) {
    %c0_i32 = arith.constant 0 : i32
    %c0_i32_0 = arith.constant 0 : i32
    %c0_i32_1 = arith.constant 0 : i32
    return %arg1, %c0_i32, %c0_i32_0 : i32, i32, i32
  }
  func.func @transform_9(%arg0: i32, %arg1: i32) -> (i32, i32, i32) {
    %c0_i32 = arith.constant 0 : i32
    %c0_i32_0 = arith.constant 0 : i32
    %c0_i32_1 = arith.constant 0 : i32
    return %arg1, %c0_i32, %c0_i32_0 : i32, i32, i32
  }
  func.func @transform_10(%arg0: i32, %arg1: i32) -> (i32, i32, i32) {
    %c0_i32 = arith.constant 0 : i32
    %c0_i32_0 = arith.constant 0 : i32
    %c0_i32_1 = arith.constant 0 : i32
    return %arg1, %c0_i32, %c0_i32_0 : i32, i32, i32
  }
  func.func @transform_11(%arg0: i32, %arg1: i32) -> (i32, i32, i32) {
    %c0_i32 = arith.constant 0 : i32
    %c0_i32_0 = arith.constant 0 : i32
    %c0_i32_1 = arith.constant 0 : i32
    return %arg1, %c0_i32, %c0_i32_0 : i32, i32, i32
  }
  func.func @transform_12(%arg0: i32, %arg1: i32) -> (i32, i32, i32) {
    %c0_i32 = arith.constant 0 : i32
    %c0_i32_0 = arith.constant 0 : i32
    %c0_i32_1 = arith.constant 0 : i32
    return %arg1, %c0_i32, %c0_i32_0 : i32, i32, i32
  }
  func.func @transform_13(%arg0: i32, %arg1: i32) -> (i32, i32, i32) {
    %c0_i32 = arith.constant 0 : i32
    %c0_i32_0 = arith.constant 0 : i32
    %c0_i32_1 = arith.constant 0 : i32
    return %arg1, %c0_i32, %c0_i32_0 : i32, i32, i32
  }
  func.func @transform_14(%arg0: i32, %arg1: i32) -> (i32, i32, i32) {
    %c0_i32 = arith.constant 0 : i32
    %c0_i32_0 = arith.constant 0 : i32
    %c0_i32_1 = arith.constant 0 : i32
    return %arg1, %c0_i32, %c0_i32_0 : i32, i32, i32
  }
  func.func @transform_15(%arg0: i32, %arg1: i32) -> (i32, i32) {
    %c0_i32 = arith.constant 0 : i32
    %c0_i32_0 = arith.constant 0 : i32
    %c0_i32_1 = arith.constant 0 : i32
    return %c0_i32, %c0_i32_0 : i32, i32
  }
  func.func @transform_16(%arg0: i32, %arg1: i32) -> (i32, i32) {
    %c0_i32 = arith.constant 0 : i32
    %c0_i32_0 = arith.constant 0 : i32
    %c0_i32_1 = arith.constant 0 : i32
    return %c0_i32, %c0_i32_0 : i32, i32
  }
  func.func @transform_17(%arg0: i32, %arg1: i32) -> (i32, i32, i32) {
    %c0_i32 = arith.constant 0 : i32
    %c0_i32_0 = arith.constant 0 : i32
    %c0_i32_1 = arith.constant 0 : i32
    return %arg0, %c0_i32, %c0_i32_0 : i32, i32, i32
  }
}

</mosaic_0001>

<llo_original>
// kernel: _lambda_.1
$region0: #{_lambda_.1}
  #allocation0 [shape = 'u32[]', space=smem, size = 0x4, offset = 0x4, fixed_abs, tag = 'smem constant byte address 0x4 - core index']
  #allocation1 [shape = 'u32[72,128]{1,0:T(1,128)}', space=vmem, size = 0x9000, scoped, tag = 'internal scratch']
  #allocation2 [shape = 'f32[8,32]{1,0:T(8,128)}', space=vmem, size = 0x1000, scoped, tag = 'scratch operand']
  %s0 = inlined_call_operand.vmem [shape: f32[2,8,32], index: 0, kind: input, shape index: {}]
  %s1 = inlined_call_operand.vmem [shape: f32[1,8,32], index: 1, kind: input, shape index: {}]
  %s2 = inlined_call_operand.vmem [shape: f32[2,1,8], index: 2, kind: input, shape index: {}]
  %s3 = inlined_call_operand.vmem [shape: f32[1,32], index: 3, kind: input, shape index: {}]
  %s4 = inlined_call_operand.vmem [shape: f32[1,32], index: 4, kind: input, shape index: {}]
  %s5 = inlined_call_operand.vmem [shape: bf16[2,32,96], index: 5, kind: input, shape index: {}]
  %s6 = inlined_call_operand.vmem [shape: f32[2,1,96], index: 6, kind: input, shape index: {}]
  %s7 = inlined_call_operand.vmem [shape: bf16[2,32,64], index: 7, kind: input, shape index: {}]
  %s8 = inlined_call_operand.vmem [shape: f32[2,1,64], index: 8, kind: input, shape index: {}]
  %s9 = inlined_call_operand.vmem [shape: bf16[2,64,32], index: 9, kind: input, shape index: {}]
  %s10 = inlined_call_operand.vmem [shape: f32[2,1,32], index: 10, kind: input, shape index: {}]
  %s11 = inlined_call_operand.vmem [shape: f32[2,1,32], index: 11, kind: input, shape index: {}]
  %s12 = inlined_call_operand.vmem [shape: f32[2,1,32], index: 12, kind: input, shape index: {}]
  %s13 = inlined_call_operand.vmem [shape: f32[2,1,32], index: 13, kind: input, shape index: {}]
  %s14 = inlined_call_operand.vmem [shape: f32[2,1,32], index: 14, kind: input, shape index: {}]
  %s15 = inlined_call_operand.vmem [shape: bf16[32,128], index: 15, kind: input, shape index: {}]
  %s16 = inlined_call_operand.vmem [shape: f32[1,128], index: 16, kind: input, shape index: {}]
  %s17 = inlined_call_operand.vmem [shape: f32[2,8,128], index: 17, kind: output, shape index: {}]
  %s18 = sld [smem:[#allocation0]]
  $region109: #{_lambda_.1} parent=0
    _
  %s20 = ssub.s32 1, %s18
  %s21 = scalar_select 0, %s20, %s18
  loop: start=0, step=1, limit=6
  $region2: #{_lambda_.1} parent=0 // loop_pre_header
    _
  $region3: #{_lambda_.1} parent=0 // loop_header
    %s23 = sphi 0, %s27
    %p24 = scmp.ge.s32.totalorder %s23, 6
    %s30 = sphi 0, %s42
    %s31 = sphi 0, %s38
    %s32 = sphi 0, %s30
    %s33 = sphi 0, %s31
    %s34 = sphi 0, %s32
    %s35 = sphi 0, %s33
    %s45 = sphi 0, %s47
    %s48 = sphi 0, %s45
    %s49 = sphi 0, %s48
    %s65 = sphi 0, %s49
    %s69 = sphi 0, %s69
    %s71 = sphi 0, %s69
    %s72 = sphi 0, %s71
    %s86 = sphi 0, %s72
    %s92 = sphi 0, %s94
    %s95 = sphi 0, %s92
    %s96 = sphi 0, %s95
    %s112 = sphi 0, %s96
    %s116 = sphi 0, %s116
    %s118 = sphi 0, %s116
    %s119 = sphi 0, %s118
    %s133 = sphi 0, %s119
    %s137 = sphi 0, %s137
    %s139 = sphi 0, %s137
    %s140 = sphi 0, %s139
    %s154 = sphi 0, %s140
    %s160 = sphi 0, %s162
    %s163 = sphi 0, %s160
    %s164 = sphi 0, %s163
    %s180 = sphi 0, %s164
    %s186 = sphi 0, %s188
    %s189 = sphi 0, %s186
    %s190 = sphi 0, %s189
    %s206 = sphi 0, %s190
    %s212 = sphi 0, %s214
    %s215 = sphi 0, %s212
    %s216 = sphi 0, %s215
    %s232 = sphi 0, %s216
    %s238 = sphi 0, %s240
    %s241 = sphi 0, %s238
    %s242 = sphi 0, %s241
    %s258 = sphi 0, %s242
    %s264 = sphi 0, %s266
    %s267 = sphi 0, %s264
    %s268 = sphi 0, %s267
    %s284 = sphi 0, %s268
    %s290 = sphi 0, %s292
    %s293 = sphi 0, %s290
    %s294 = sphi 0, %s293
    %s310 = sphi 0, %s294
    %s316 = sphi 0, %s318
    %s319 = sphi 0, %s316
    %s320 = sphi 0, %s319
    %s336 = sphi 0, %s320
    %s342 = sphi 0, %s344
    %s345 = sphi 0, %s342
    %s346 = sphi 0, %s345
    %s362 = sphi 0, %s346
    %s368 = sphi 0, %s370
    %s371 = sphi 0, %s368
    %s372 = sphi 0, %s371
    %s388 = sphi 0, %s372
    %s394 = sphi 0, %s396
    %s397 = sphi 0, %s394
    %s398 = sphi 0, %s397
    %s414 = sphi 0, %s398
    %s418 = sphi 0, %s418
    %s420 = sphi 0, %s418
    %s421 = sphi 0, %s420
    %s435 = sphi 0, %s421
    %s439 = sphi 0, %s439
    %s441 = sphi 0, %s439
    %s442 = sphi 0, %s441
    %s456 = sphi 0, %s442
    %s462 = sphi 0, %s464
    %s465 = sphi 0, %s462
    %s466 = sphi 0, %s465
    %s482 = sphi 0, %s466
  $region4: #{_lambda_.1} parent=0 // loop_header_branch
    %26 = sbr.rel (%p24) target = $region8
  $region5: #{_lambda_.1} parent=0 // loop_body
    %s28 = ssub.s32 %s23, 1
    %s29 = ssub.s32 %s23, 2
    %s36 = sadd.s32 1, %s31
    %p37 = scmp.ge.s32.totalorder %s36, 2
    %s38 = scalar_select %p37, 0, %s36
    %s39 = sadd.s32 1, %s30
    %s40 = scalar_select %p37, %s39, %s30
    %p41 = scmp.ge.s32.totalorder %s40, 2
    %s42 = scalar_select %p41, 0, %s40
    %s43 = ssub.s32 %s30, %s42
    %p44 = scmp.eq.s32.totalorder %s43, 0
    %s46 = sadd.s32 %s45, 1
    %s47 = scalar_select %p44, %s45, %s46
    %p50 = pneg %p44
    %p51 = scmp.eq.s32.totalorder %s23, 3
    %p52 = por %p50, %p51
    %p53 = scmp.ne.s32.totalorder %s45, %s48
    %p54 = scmp.eq.s32.totalorder %s23, 0
    %p55 = por %p53, %p54
    %p56 = scmp.ne.s32.totalorder %s45, %s48
    %p57 = scmp.eq.s32.totalorder %s28, 3
    %p58 = por %p56, %p57
    %p59 = scmp.ne.s32.totalorder %s48, %s49
    %p60 = scmp.eq.s32.totalorder %s28, 0
    %p61 = por %p59, %p60
    %p62 = scmp.ne.s32.totalorder %s48, %s49
    %p63 = scmp.eq.s32.totalorder %s29, 3
    %p64 = por %p62, %p63
    %p66 = scmp.ne.s32.totalorder %s49, %s65
    %p67 = scmp.eq.s32.totalorder %s29, 0
    %p68 = por %p66, %p67
    %s70 = sadd.s32 %s69, 1
    %p73 = scmp.eq.s32.totalorder %s23, 3
    %p74 = scmp.ne.s32.totalorder %s69, %s71
    %p75 = scmp.eq.s32.totalorder %s23, 0
    %p76 = por %p74, %p75
    %p77 = scmp.ne.s32.totalorder %s69, %s71
    %p78 = scmp.eq.s32.totalorder %s28, 3
    %p79 = por %p77, %p78
    %p80 = scmp.ne.s32.totalorder %s71, %s72
    %p81 = scmp.eq.s32.totalorder %s28, 0
    %p82 = por %p80, %p81
    %p83 = scmp.ne.s32.totalorder %s71, %s72
    %p84 = scmp.eq.s32.totalorder %s29, 3
    %p85 = por %p83, %p84
    %p87 = scmp.ne.s32.totalorder %s72, %s86
    %p88 = scmp.eq.s32.totalorder %s29, 0
    %p89 = por %p87, %p88
    %s90 = ssub.s32 %s30, %s42
    %p91 = scmp.eq.s32.totalorder %s90, 0
    %s93 = sadd.s32 %s92, 1
    %s94 = scalar_select %p91, %s92, %s93
    %p97 = pneg %p91
    %p98 = scmp.eq.s32.totalorder %s23, 3
    %p99 = por %p97, %p98
    %p100 = scmp.ne.s32.totalorder %s92, %s95
    %p101 = scmp.eq.s32.totalorder %s23, 0
    %p102 = por %p100, %p101
    %p103 = scmp.ne.s32.totalorder %s92, %s95
    %p104 = scmp.eq.s32.totalorder %s28, 3
    %p105 = por %p103, %p104
    %p106 = scmp.ne.s32.totalorder %s95, %s96
    %p107 = scmp.eq.s32.totalorder %s28, 0
    %p108 = por %p106, %p107
    %p109 = scmp.ne.s32.totalorder %s95, %s96
    %p110 = scmp.eq.s32.totalorder %s29, 3
    %p111 = por %p109, %p110
    %p113 = scmp.ne.s32.totalorder %s96, %s112
    %p114 = scmp.eq.s32.totalorder %s29, 0
    %p115 = por %p113, %p114
    %s117 = sadd.s32 %s116, 1
    %p120 = scmp.eq.s32.totalorder %s23, 3
    %p121 = scmp.ne.s32.totalorder %s116, %s118
    %p122 = scmp.eq.s32.totalorder %s23, 0
    %p123 = por %p121, %p122
    %p124 = scmp.ne.s32.totalorder %s116, %s118
    %p125 = scmp.eq.s32.totalorder %s28, 3
    %p126 = por %p124, %p125
    %p127 = scmp.ne.s32.totalorder %s118, %s119
    %p128 = scmp.eq.s32.totalorder %s28, 0
    %p129 = por %p127, %p128
    %p130 = scmp.ne.s32.totalorder %s118, %s119
    %p131 = scmp.eq.s32.totalorder %s29, 3
    %p132 = por %p130, %p131
    %p134 = scmp.ne.s32.totalorder %s119, %s133
    %p135 = scmp.eq.s32.totalorder %s29, 0
    %p136 = por %p134, %p135
    %s138 = sadd.s32 %s137, 1
    %p141 = scmp.eq.s32.totalorder %s23, 3
    %p142 = scmp.ne.s32.totalorder %s137, %s139
    %p143 = scmp.eq.s32.totalorder %s23, 0
    %p144 = por %p142, %p143
    %p145 = scmp.ne.s32.totalorder %s137, %s139
    %p146 = scmp.eq.s32.totalorder %s28, 3
    %p147 = por %p145, %p146
    %p148 = scmp.ne.s32.totalorder %s139, %s140
    %p149 = scmp.eq.s32.totalorder %s28, 0
    %p150 = por %p148, %p149
    %p151 = scmp.ne.s32.totalorder %s139, %s140
    %p152 = scmp.eq.s32.totalorder %s29, 3
    %p153 = por %p151, %p152
    %p155 = scmp.ne.s32.totalorder %s140, %s154
    %p156 = scmp.eq.s32.totalorder %s29, 0
    %p157 = por %p155, %p156
    %s158 = ssub.s32 %s31, %s38
    %p159 = scmp.eq.s32.totalorder %s158, 0
    %s161 = sadd.s32 %s160, 1
    %s162 = scalar_select %p159, %s160, %s161
    %p165 = pneg %p159
    %p166 = scmp.eq.s32.totalorder %s23, 3
    %p167 = por %p165, %p166
    %p168 = scmp.ne.s32.totalorder %s160, %s163
    %p169 = scmp.eq.s32.totalorder %s23, 0
    %p170 = por %p168, %p169
    %p171 = scmp.ne.s32.totalorder %s160, %s163
    %p172 = scmp.eq.s32.totalorder %s28, 3
    %p173 = por %p171, %p172
    %p174 = scmp.ne.s32.totalorder %s163, %s164
    %p175 = scmp.eq.s32.totalorder %s28, 0
    %p176 = por %p174, %p175
    %p177 = scmp.ne.s32.totalorder %s163, %s164
    %p178 = scmp.eq.s32.totalorder %s29, 3
    %p179 = por %p177, %p178
    %p181 = scmp.ne.s32.totalorder %s164, %s180
    %p182 = scmp.eq.s32.totalorder %s29, 0
    %p183 = por %p181, %p182
    %s184 = ssub.s32 %s31, %s38
    %p185 = scmp.eq.s32.totalorder %s184, 0
    %s187 = sadd.s32 %s186, 1
    %s188 = scalar_select %p185, %s186, %s187
    %p191 = pneg %p185
    %p192 = scmp.eq.s32.totalorder %s23, 3
    %p193 = por %p191, %p192
    %p194 = scmp.ne.s32.totalorder %s186, %s189
    %p195 = scmp.eq.s32.totalorder %s23, 0
    %p196 = por %p194, %p195
    %p197 = scmp.ne.s32.totalorder %s186, %s189
    %p198 = scmp.eq.s32.totalorder %s28, 3
    %p199 = por %p197, %p198
    %p200 = scmp.ne.s32.totalorder %s189, %s190
    %p201 = scmp.eq.s32.totalorder %s28, 0
    %p202 = por %p200, %p201
    %p203 = scmp.ne.s32.totalorder %s189, %s190
    %p204 = scmp.eq.s32.totalorder %s29, 3
    %p205 = por %p203, %p204
    %p207 = scmp.ne.s32.totalorder %s190, %s206
    %p208 = scmp.eq.s32.totalorder %s29, 0
    %p209 = por %p207, %p208
    %s210 = ssub.s32 %s31, %s38
    %p211 = scmp.eq.s32.totalorder %s210, 0
    %s213 = sadd.s32 %s212, 1
    %s214 = scalar_select %p211, %s212, %s213
    %p217 = pneg %p211
    %p218 = scmp.eq.s32.totalorder %s23, 3
    %p219 = por %p217, %p218
    %p220 = scmp.ne.s32.totalorder %s212, %s215
    %p221 = scmp.eq.s32.totalorder %s23, 0
    %p222 = por %p220, %p221
    %p223 = scmp.ne.s32.totalorder %s212, %s215
    %p224 = scmp.eq.s32.totalorder %s28, 3
    %p225 = por %p223, %p224
    %p226 = scmp.ne.s32.totalorder %s215, %s216
    %p227 = scmp.eq.s32.totalorder %s28, 0
    %p228 = por %p226, %p227
    %p229 = scmp.ne.s32.totalorder %s215, %s216
    %p230 = scmp.eq.s32.totalorder %s29, 3
    %p231 = por %p229, %p230
    %p233 = scmp.ne.s32.totalorder %s216, %s232
    %p234 = scmp.eq.s32.totalorder %s29, 0
    %p235 = por %p233, %p234
    %s236 = ssub.s32 %s31, %s38
    %p237 = scmp.eq.s32.totalorder %s236, 0
    %s239 = sadd.s32 %s238, 1
    %s240 = scalar_select %p237, %s238, %s239
    %p243 = pneg %p237
    %p244 = scmp.eq.s32.totalorder %s23, 3
    %p245 = por %p243, %p244
    %p246 = scmp.ne.s32.totalorder %s238, %s241
    %p247 = scmp.eq.s32.totalorder %s23, 0
    %p248 = por %p246, %p247
    %p249 = scmp.ne.s32.totalorder %s238, %s241
    %p250 = scmp.eq.s32.totalorder %s28, 3
    %p251 = por %p249, %p250
    %p252 = scmp.ne.s32.totalorder %s241, %s242
    %p253 = scmp.eq.s32.totalorder %s28, 0
    %p254 = por %p252, %p253
    %p255 = scmp.ne.s32.totalorder %s241, %s242
    %p256 = scmp.eq.s32.totalorder %s29, 3
    %p257 = por %p255, %p256
    %p259 = scmp.ne.s32.totalorder %s242, %s258
    %p260 = scmp.eq.s32.totalorder %s29, 0
    %p261 = por %p259, %p260
    %s262 = ssub.s32 %s31, %s38
    %p263 = scmp.eq.s32.totalorder %s262, 0
    %s265 = sadd.s32 %s264, 1
    %s266 = scalar_select %p263, %s264, %s265
    %p269 = pneg %p263
    %p270 = scmp.eq.s32.totalorder %s23, 3
    %p271 = por %p269, %p270
    %p272 = scmp.ne.s32.totalorder %s264, %s267
    %p273 = scmp.eq.s32.totalorder %s23, 0
    %p274 = por %p272, %p273
    %p275 = scmp.ne.s32.totalorder %s264, %s267
    %p276 = scmp.eq.s32.totalorder %s28, 3
    %p277 = por %p275, %p276
    %p278 = scmp.ne.s32.totalorder %s267, %s268
    %p279 = scmp.eq.s32.totalorder %s28, 0
    %p280 = por %p278, %p279
    %p281 = scmp.ne.s32.totalorder %s267, %s268
    %p282 = scmp.eq.s32.totalorder %s29, 3
    %p283 = por %p281, %p282
    %p285 = scmp.ne.s32.totalorder %s268, %s284
    %p286 = scmp.eq.s32.totalorder %s29, 0
    %p287 = por %p285, %p286
    %s288 = ssub.s32 %s31, %s38
    %p289 = scmp.eq.s32.totalorder %s288, 0
    %s291 = sadd.s32 %s290, 1
    %s292 = scalar_select %p289, %s290, %s291
    %p295 = pneg %p289
    %p296 = scmp.eq.s32.totalorder %s23, 3
    %p297 = por %p295, %p296
    %p298 = scmp.ne.s32.totalorder %s290, %s293
    %p299 = scmp.eq.s32.totalorder %s23, 0
    %p300 = por %p298, %p299
    %p301 = scmp.ne.s32.totalorder %s290, %s293
    %p302 = scmp.eq.s32.totalorder %s28, 3
    %p303 = por %p301, %p302
    %p304 = scmp.ne.s32.totalorder %s293, %s294
    %p305 = scmp.eq.s32.totalorder %s28, 0
    %p306 = por %p304, %p305
    %p307 = scmp.ne.s32.totalorder %s293, %s294
    %p308 = scmp.eq.s32.totalorder %s29, 3
    %p309 = por %p307, %p308
    %p311 = scmp.ne.s32.totalorder %s294, %s310
    %p312 = scmp.eq.s32.totalorder %s29, 0
    %p313 = por %p311, %p312
    %s314 = ssub.s32 %s31, %s38
    %p315 = scmp.eq.s32.totalorder %s314, 0
    %s317 = sadd.s32 %s316, 1
    %s318 = scalar_select %p315, %s316, %s317
    %p321 = pneg %p315
    %p322 = scmp.eq.s32.totalorder %s23, 3
    %p323 = por %p321, %p322
    %p324 = scmp.ne.s32.totalorder %s316, %s319
    %p325 = scmp.eq.s32.totalorder %s23, 0
    %p326 = por %p324, %p325
    %p327 = scmp.ne.s32.totalorder %s316, %s319
    %p328 = scmp.eq.s32.totalorder %s28, 3
    %p329 = por %p327, %p328
    %p330 = scmp.ne.s32.totalorder %s319, %s320
    %p331 = scmp.eq.s32.totalorder %s28, 0
    %p332 = por %p330, %p331
    %p333 = scmp.ne.s32.totalorder %s319, %s320
    %p334 = scmp.eq.s32.totalorder %s29, 3
    %p335 = por %p333, %p334
    %p337 = scmp.ne.s32.totalorder %s320, %s336
    %p338 = scmp.eq.s32.totalorder %s29, 0
    %p339 = por %p337, %p338
    %s340 = ssub.s32 %s31, %s38
    %p341 = scmp.eq.s32.totalorder %s340, 0
    %s343 = sadd.s32 %s342, 1
    %s344 = scalar_select %p341, %s342, %s343
    %p347 = pneg %p341
    %p348 = scmp.eq.s32.totalorder %s23, 3
    %p349 = por %p347, %p348
    %p350 = scmp.ne.s32.totalorder %s342, %s345
    %p351 = scmp.eq.s32.totalorder %s23, 0
    %p352 = por %p350, %p351
    %p353 = scmp.ne.s32.totalorder %s342, %s345
    %p354 = scmp.eq.s32.totalorder %s28, 3
    %p355 = por %p353, %p354
    %p356 = scmp.ne.s32.totalorder %s345, %s346
    %p357 = scmp.eq.s32.totalorder %s28, 0
    %p358 = por %p356, %p357
    %p359 = scmp.ne.s32.totalorder %s345, %s346
    %p360 = scmp.eq.s32.totalorder %s29, 3
    %p361 = por %p359, %p360
    %p363 = scmp.ne.s32.totalorder %s346, %s362
    %p364 = scmp.eq.s32.totalorder %s29, 0
    %p365 = por %p363, %p364
    %s366 = ssub.s32 %s31, %s38
    %p367 = scmp.eq.s32.totalorder %s366, 0
    %s369 = sadd.s32 %s368, 1
    %s370 = scalar_select %p367, %s368, %s369
    %p373 = pneg %p367
    %p374 = scmp.eq.s32.totalorder %s23, 3
    %p375 = por %p373, %p374
    %p376 = scmp.ne.s32.totalorder %s368, %s371
    %p377 = scmp.eq.s32.totalorder %s23, 0
    %p378 = por %p376, %p377
    %p379 = scmp.ne.s32.totalorder %s368, %s371
    %p380 = scmp.eq.s32.totalorder %s28, 3
    %p381 = por %p379, %p380
    %p382 = scmp.ne.s32.totalorder %s371, %s372
    %p383 = scmp.eq.s32.totalorder %s28, 0
    %p384 = por %p382, %p383
    %p385 = scmp.ne.s32.totalorder %s371, %s372
    %p386 = scmp.eq.s32.totalorder %s29, 3
    %p387 = por %p385, %p386
    %p389 = scmp.ne.s32.totalorder %s372, %s388
    %p390 = scmp.eq.s32.totalorder %s29, 0
    %p391 = por %p389, %p390
    %s392 = ssub.s32 %s31, %s38
    %p393 = scmp.eq.s32.totalorder %s392, 0
    %s395 = sadd.s32 %s394, 1
    %s396 = scalar_select %p393, %s394, %s395
    %p399 = pneg %p393
    %p400 = scmp.eq.s32.totalorder %s23, 3
    %p401 = por %p399, %p400
    %p402 = scmp.ne.s32.totalorder %s394, %s397
    %p403 = scmp.eq.s32.totalorder %s23, 0
    %p404 = por %p402, %p403
    %p405 = scmp.ne.s32.totalorder %s394, %s397
    %p406 = scmp.eq.s32.totalorder %s28, 3
    %p407 = por %p405, %p406
    %p408 = scmp.ne.s32.totalorder %s397, %s398
    %p409 = scmp.eq.s32.totalorder %s28, 0
    %p410 = por %p408, %p409
    %p411 = scmp.ne.s32.totalorder %s397, %s398
    %p412 = scmp.eq.s32.totalorder %s29, 3
    %p413 = por %p411, %p412
    %p415 = scmp.ne.s32.totalorder %s398, %s414
    %p416 = scmp.eq.s32.totalorder %s29, 0
    %p417 = por %p415, %p416
    %s419 = sadd.s32 %s418, 1
    %p422 = scmp.eq.s32.totalorder %s23, 3
    %p423 = scmp.ne.s32.totalorder %s418, %s420
    %p424 = scmp.eq.s32.totalorder %s23, 0
    %p425 = por %p423, %p424
    %p426 = scmp.ne.s32.totalorder %s418, %s420
    %p427 = scmp.eq.s32.totalorder %s28, 3
    %p428 = por %p426, %p427
    %p429 = scmp.ne.s32.totalorder %s420, %s421
    %p430 = scmp.eq.s32.totalorder %s28, 0
    %p431 = por %p429, %p430
    %p432 = scmp.ne.s32.totalorder %s420, %s421
    %p433 = scmp.eq.s32.totalorder %s29, 3
    %p434 = por %p432, %p433
    %p436 = scmp.ne.s32.totalorder %s421, %s435
    %p437 = scmp.eq.s32.totalorder %s29, 0
    %p438 = por %p436, %p437
    %s440 = sadd.s32 %s439, 1
    %p443 = scmp.eq.s32.totalorder %s23, 3
    %p444 = scmp.ne.s32.totalorder %s439, %s441
    %p445 = scmp.eq.s32.totalorder %s23, 0
    %p446 = por %p444, %p445
    %p447 = scmp.ne.s32.totalorder %s439, %s441
    %p448 = scmp.eq.s32.totalorder %s28, 3
    %p449 = por %p447, %p448
    %p450 = scmp.ne.s32.totalorder %s441, %s442
    %p451 = scmp.eq.s32.totalorder %s28, 0
    %p452 = por %p450, %p451
    %p453 = scmp.ne.s32.totalorder %s441, %s442
    %p454 = scmp.eq.s32.totalorder %s29, 3
    %p455 = por %p453, %p454
    %p457 = scmp.ne.s32.totalorder %s442, %s456
    %p458 = scmp.eq.s32.totalorder %s29, 0
    %p459 = por %p457, %p458
    %s460 = ssub.s32 %s30, %s42
    %p461 = scmp.eq.s32.totalorder %s460, 0
    %s463 = sadd.s32 %s462, 1
    %s464 = scalar_select %p461, %s462, %s463
    %p467 = pneg %p461
    %p468 = scmp.eq.s32.totalorder %s23, 3
    %p469 = por %p467, %p468
    %p470 = scmp.ne.s32.totalorder %s462, %s465
    %p471 = scmp.eq.s32.totalorder %s23, 0
    %p472 = por %p470, %p471
    %p473 = scmp.ne.s32.totalorder %s462, %s465
    %p474 = scmp.eq.s32.totalorder %s28, 3
    %p475 = por %p473, %p474
    %p476 = scmp.ne.s32.totalorder %s465, %s466
    %p477 = scmp.eq.s32.totalorder %s28, 0
    %p478 = por %p476, %p477
    %p479 = scmp.ne.s32.totalorder %s465, %s466
    %p480 = scmp.eq.s32.totalorder %s29, 3
    %p481 = por %p479, %p480
    %p483 = scmp.ne.s32.totalorder %s466, %s482
    %p484 = scmp.eq.s32.totalorder %s29, 0
    %p485 = por %p483, %p484
    %p486 = scmp.le.s32.totalorder 1, %s23
    %p487 = scmp.lt.s32.totalorder %s23, 5
    %p488 = pnand %p486, %p487
    %p489 = pneg %p488
    // Predicated region
    $region9: #{_lambda_.1} parent=5 // pred_check
      _
    $region10: #{_lambda_.1} parent=5 // pred_check_branch
      %491 = sbr.rel (%p488) target = $region12
    $region11: #{_lambda_.1} parent=5 // pred_region
      %s492 = ssub.s32 %s23, 1
      // Predicated region
      $region13: #{_lambda_.1} parent=11 // pred_check
        %p493 = pneg %p82
      $region14: #{_lambda_.1} parent=11 // pred_check_branch
        %495 = sbr.rel (%p493) target = $region16
      $region15: #{_lambda_.1} parent=11 // pred_region
        _
      $region16: #{_lambda_.1} parent=11 // pred_fallthru
        _
      // Predicated region
      $region17: #{_lambda_.1} parent=11 // pred_check
        %p496 = pneg %p129
      $region18: #{_lambda_.1} parent=11 // pred_check_branch
        %498 = sbr.rel (%p496) target = $region20
      $region19: #{_lambda_.1} parent=11 // pred_region
        _
      $region20: #{_lambda_.1} parent=11 // pred_fallthru
        _
      // Predicated region
      $region21: #{_lambda_.1} parent=11 // pred_check
        %p499 = pneg %p150
      $region22: #{_lambda_.1} parent=11 // pred_check_branch
        %501 = sbr.rel (%p499) target = $region24
      $region23: #{_lambda_.1} parent=11 // pred_region
        _
      $region24: #{_lambda_.1} parent=11 // pred_fallthru
        _
      // Predicated region
      $region25: #{_lambda_.1} parent=11 // pred_check
        %p502 = pneg %p431
      $region26: #{_lambda_.1} parent=11 // pred_check_branch
        %504 = sbr.rel (%p502) target = $region28
      $region27: #{_lambda_.1} parent=11 // pred_region
        _
      $region28: #{_lambda_.1} parent=11 // pred_fallthru
        _
      // Predicated region
      $region29: #{_lambda_.1} parent=11 // pred_check
        %p505 = pneg %p452
      $region30: #{_lambda_.1} parent=11 // pred_check_branch
        %507 = sbr.rel (%p505) target = $region32
      $region31: #{_lambda_.1} parent=11 // pred_region
        _
      $region32: #{_lambda_.1} parent=11 // pred_fallthru
        _
    $region12: #{_lambda_.1} parent=5 // pred_fallthru
      _
    %p508 = scmp.lt.s32.totalorder %s23, 4
    // Predicated region
    $region33: #{_lambda_.1} parent=5 // pred_check
      %p509 = pneg %p508
    $region34: #{_lambda_.1} parent=5 // pred_check_branch
      %511 = sbr.rel (%p509) target = $region36
    $region35: #{_lambda_.1} parent=5 // pred_region
      // Predicated region
      $region37: #{_lambda_.1} parent=35 // pred_check
        %p512 = pneg %p55
      $region38: #{_lambda_.1} parent=35 // pred_check_branch
        %514 = sbr.rel (%p512) target = $region40
      $region39: #{_lambda_.1} parent=35 // pred_region
        %p515 = scmp.lt.s32.totalorder %s30, 1
        %s516 = scalar_select %p515, %s30, 1
        %s517 = smul.addr %s516, 8
        %s518 = scalar_lea.vmem %s0, %s517
      $region40: #{_lambda_.1} parent=35 // pred_fallthru
        _
      // Predicated region
      $region41: #{_lambda_.1} parent=35 // pred_check
        %p519 = pneg %p102
      $region42: #{_lambda_.1} parent=35 // pred_check_branch
        %521 = sbr.rel (%p519) target = $region44
      $region43: #{_lambda_.1} parent=35 // pred_region
        %p522 = scmp.lt.s32.totalorder %s30, 1
        %s523 = scalar_select %p522, %s30, 1
        %s524 = scalar_lea.vmem %s2, %s523
      $region44: #{_lambda_.1} parent=35 // pred_fallthru
        _
      // Predicated region
      $region45: #{_lambda_.1} parent=35 // pred_check
        %p525 = pneg %p170
      $region46: #{_lambda_.1} parent=35 // pred_check_branch
        %527 = sbr.rel (%p525) target = $region48
      $region47: #{_lambda_.1} parent=35 // pred_region
        %p528 = scmp.lt.s32.totalorder %s31, 1
        %s529 = scalar_select %p528, %s31, 1
        %s530 = smul.addr %s529, 4
        %s531 = smul.addr %s530, 4
        %s532 = scalar_lea.vmem %s5, %s531
      $region48: #{_lambda_.1} parent=35 // pred_fallthru
        _
      // Predicated region
      $region49: #{_lambda_.1} parent=35 // pred_check
        %p533 = pneg %p196
      $region50: #{_lambda_.1} parent=35 // pred_check_branch
        %535 = sbr.rel (%p533) target = $region52
      $region51: #{_lambda_.1} parent=35 // pred_region
        %p536 = scmp.lt.s32.totalorder %s31, 1
        %s537 = scalar_select %p536, %s31, 1
        %s538 = scalar_lea.vmem %s6, %s537
      $region52: #{_lambda_.1} parent=35 // pred_fallthru
        _
      // Predicated region
      $region53: #{_lambda_.1} parent=35 // pred_check
        %p539 = pneg %p222
      $region54: #{_lambda_.1} parent=35 // pred_check_branch
        %541 = sbr.rel (%p539) target = $region56
      $region55: #{_lambda_.1} parent=35 // pred_region
        %p542 = scmp.lt.s32.totalorder %s31, 1
        %s543 = scalar_select %p542, %s31, 1
        %s544 = smul.addr %s543, 4
        %s545 = smul.addr %s544, 4
        %s546 = scalar_lea.vmem %s7, %s545
      $region56: #{_lambda_.1} parent=35 // pred_fallthru
        _
      // Predicated region
      $region57: #{_lambda_.1} parent=35 // pred_check
        %p547 = pneg %p248
      $region58: #{_lambda_.1} parent=35 // pred_check_branch
        %549 = sbr.rel (%p547) target = $region60
      $region59: #{_lambda_.1} parent=35 // pred_region
        %p550 = scmp.lt.s32.totalorder %s31, 1
        %s551 = scalar_select %p550, %s31, 1
        %s552 = scalar_lea.vmem %s8, %s551
      $region60: #{_lambda_.1} parent=35 // pred_fallthru
        _
      // Predicated region
      $region61: #{_lambda_.1} parent=35 // pred_check
        %p553 = pneg %p274
      $region62: #{_lambda_.1} parent=35 // pred_check_branch
        %555 = sbr.rel (%p553) target = $region64
      $region63: #{_lambda_.1} parent=35 // pred_region
        %p556 = scmp.lt.s32.totalorder %s31, 1
        %s557 = scalar_select %p556, %s31, 1
        %s558 = smul.addr %s557, 8
        %s559 = smul.addr %s558, 4
        %s560 = scalar_lea.vmem %s9, %s559
      $region64: #{_lambda_.1} parent=35 // pred_fallthru
        _
      // Predicated region
      $region65: #{_lambda_.1} parent=35 // pred_check
        %p561 = pneg %p300
      $region66: #{_lambda_.1} parent=35 // pred_check_branch
        %563 = sbr.rel (%p561) target = $region68
      $region67: #{_lambda_.1} parent=35 // pred_region
        %p564 = scmp.lt.s32.totalorder %s31, 1
        %s565 = scalar_select %p564, %s31, 1
        %s566 = scalar_lea.vmem %s10, %s565
      $region68: #{_lambda_.1} parent=35 // pred_fallthru
        _
      // Predicated region
      $region69: #{_lambda_.1} parent=35 // pred_check
        %p567 = pneg %p326
      $region70: #{_lambda_.1} parent=35 // pred_check_branch
        %569 = sbr.rel (%p567) target = $region72
      $region71: #{_lambda_.1} parent=35 // pred_region
        %p570 = scmp.lt.s32.totalorder %s31, 1
        %s571 = scalar_select %p570, %s31, 1
        %s572 = scalar_lea.vmem %s11, %s571
      $region72: #{_lambda_.1} parent=35 // pred_fallthru
        _
      // Predicated region
      $region73: #{_lambda_.1} parent=35 // pred_check
        %p573 = pneg %p352
      $region74: #{_lambda_.1} parent=35 // pred_check_branch
        %575 = sbr.rel (%p573) target = $region76
      $region75: #{_lambda_.1} parent=35 // pred_region
        %p576 = scmp.lt.s32.totalorder %s31, 1
        %s577 = scalar_select %p576, %s31, 1
        %s578 = scalar_lea.vmem %s12, %s577
      $region76: #{_lambda_.1} parent=35 // pred_fallthru
        _
      // Predicated region
      $region77: #{_lambda_.1} parent=35 // pred_check
        %p579 = pneg %p378
      $region78: #{_lambda_.1} parent=35 // pred_check_branch
        %581 = sbr.rel (%p579) target = $region80
      $region79: #{_lambda_.1} parent=35 // pred_region
        %p582 = scmp.lt.s32.totalorder %s31, 1
        %s583 = scalar_select %p582, %s31, 1
        %s584 = scalar_lea.vmem %s13, %s583
      $region80: #{_lambda_.1} parent=35 // pred_fallthru
        _
      // Predicated region
      $region81: #{_lambda_.1} parent=35 // pred_check
        %p585 = pneg %p404
      $region82: #{_lambda_.1} parent=35 // pred_check_branch
        %587 = sbr.rel (%p585) target = $region84
      $region83: #{_lambda_.1} parent=35 // pred_region
        %p588 = scmp.lt.s32.totalorder %s31, 1
        %s589 = scalar_select %p588, %s31, 1
        %s590 = scalar_lea.vmem %s14, %s589
      $region84: #{_lambda_.1} parent=35 // pred_fallthru
        _
    $region36: #{_lambda_.1} parent=5 // pred_fallthru
      _
    %p591 = scmp.le.s32.totalorder 1, %s23
    %p592 = scmp.lt.s32.totalorder %s23, 5
    %p593 = pnand %p591, %p592
    %p594 = pneg %p593
    // Predicated region
    $region85: #{_lambda_.1} parent=5 // pred_check
      _
    $region86: #{_lambda_.1} parent=5 // pred_check_branch
      %596 = sbr.rel (%p593) target = $region88
    $region87: #{_lambda_.1} parent=5 // pred_region
      %s597 = ssub.s32 %s23, 1
      %p598 = scmp.lt.s32.totalorder %s32, 1
      %s599 = scalar_select %p598, %s32, 1
      %s600 = smul.addr %s599, 8
      %s601 = scalar_lea.vmem %s0, %s600
      %p602 = pneg %p61
      %p603 = pneg %p58
      %p604 = pneg %p82
      %p605 = pneg %p79
      %p606 = scmp.lt.s32.totalorder %s32, 1
      %s607 = scalar_select %p606, %s32, 1
      %s608 = scalar_lea.vmem %s2, %s607
      %p609 = pneg %p108
      %p610 = pneg %p105
      %p611 = pneg %p129
      %p612 = pneg %p126
      %p613 = pneg %p150
      %p614 = pneg %p147
      %p615 = scmp.lt.s32.totalorder %s33, 1
      %s616 = scalar_select %p615, %s33, 1
      %s617 = smul.addr %s616, 4
      %s618 = smul.addr %s617, 4
      %s619 = scalar_lea.vmem %s5, %s618
      %p620 = pneg %p176
      %p621 = pneg %p173
      %p622 = scmp.lt.s32.totalorder %s33, 1
      %s623 = scalar_select %p622, %s33, 1
      %s624 = scalar_lea.vmem %s6, %s623
      %p625 = pneg %p202
      %p626 = pneg %p199
      %p627 = scmp.lt.s32.totalorder %s33, 1
      %s628 = scalar_select %p627, %s33, 1
      %s629 = smul.addr %s628, 4
      %s630 = smul.addr %s629, 4
      %s631 = scalar_lea.vmem %s7, %s630
      %p632 = pneg %p228
      %p633 = pneg %p225
      %p634 = scmp.lt.s32.totalorder %s33, 1
      %s635 = scalar_select %p634, %s33, 1
      %s636 = scalar_lea.vmem %s8, %s635
      %p637 = pneg %p254
      %p638 = pneg %p251
      %p639 = scmp.lt.s32.totalorder %s33, 1
      %s640 = scalar_select %p639, %s33, 1
      %s641 = smul.addr %s640, 8
      %s642 = smul.addr %s641, 4
      %s643 = scalar_lea.vmem %s9, %s642
      %p644 = pneg %p280
      %p645 = pneg %p277
      %p646 = scmp.lt.s32.totalorder %s33, 1
      %s647 = scalar_select %p646, %s33, 1
      %s648 = scalar_lea.vmem %s10, %s647
      %p649 = pneg %p306
      %p650 = pneg %p303
      %p651 = scmp.lt.s32.totalorder %s33, 1
      %s652 = scalar_select %p651, %s33, 1
      %s653 = scalar_lea.vmem %s11, %s652
      %p654 = pneg %p332
      %p655 = pneg %p329
      %p656 = scmp.lt.s32.totalorder %s33, 1
      %s657 = scalar_select %p656, %s33, 1
      %s658 = scalar_lea.vmem %s12, %s657
      %p659 = pneg %p358
      %p660 = pneg %p355
      %p661 = scmp.lt.s32.totalorder %s33, 1
      %s662 = scalar_select %p661, %s33, 1
      %s663 = scalar_lea.vmem %s13, %s662
      %p664 = pneg %p384
      %p665 = pneg %p381
      %p666 = scmp.lt.s32.totalorder %s33, 1
      %s667 = scalar_select %p666, %s33, 1
      %s668 = scalar_lea.vmem %s14, %s667
      %p669 = pneg %p410
      %p670 = pneg %p407
      %p671 = pneg %p431
      %p672 = pneg %p428
      %p673 = pneg %p452
      %p674 = pneg %p449
      %p675 = pneg %p478
      %p676 = pneg %p475
      %p677 = scmp.lt.s32.totalorder %s32, 1
      %s678 = scalar_select %p677, %s32, 1
      %s679 = smul.addr %s678, 8
      %s680 = scalar_lea.vmem %s17, %s679
      %p681 = scmp.lt.s32.totalorder %s32, 1
      %s682 = scalar_select %p681, %s32, 1
      %s683 = smul.addr %s682, 8
      %s684 = scalar_lea.vmem %s0, %s683
      %p685 = scmp.lt.s32.totalorder %s32, 1
      %s686 = scalar_select %p685, %s32, 1
      %s687 = scalar_lea.vmem %s2, %s686
      %p688 = scmp.lt.s32.totalorder %s33, 1
      %s689 = scalar_select %p688, %s33, 1
      %s690 = smul.addr %s689, 4
      %s691 = smul.addr %s690, 4
      %s692 = scalar_lea.vmem %s5, %s691
      %p693 = scmp.lt.s32.totalorder %s33, 1
      %s694 = scalar_select %p693, %s33, 1
      %s695 = scalar_lea.vmem %s6, %s694
      %p696 = scmp.lt.s32.totalorder %s33, 1
      %s697 = scalar_select %p696, %s33, 1
      %s698 = smul.addr %s697, 4
      %s699 = smul.addr %s698, 4
      %s700 = scalar_lea.vmem %s7, %s699
      %p701 = scmp.lt.s32.totalorder %s33, 1
      %s702 = scalar_select %p701, %s33, 1
      %s703 = scalar_lea.vmem %s8, %s702
      %p704 = scmp.lt.s32.totalorder %s33, 1
      %s705 = scalar_select %p704, %s33, 1
      %s706 = smul.addr %s705, 8
      %s707 = smul.addr %s706, 4
      %s708 = scalar_lea.vmem %s9, %s707
      %p709 = scmp.lt.s32.totalorder %s33, 1
      %s710 = scalar_select %p709, %s33, 1
      %s711 = scalar_lea.vmem %s10, %s710
      %p712 = scmp.lt.s32.totalorder %s33, 1
      %s713 = scalar_select %p712, %s33, 1
      %s714 = scalar_lea.vmem %s11, %s713
      %p715 = scmp.lt.s32.totalorder %s33, 1
      %s716 = scalar_select %p715, %s33, 1
      %s717 = scalar_lea.vmem %s12, %s716
      %p718 = scmp.lt.s32.totalorder %s33, 1
      %s719 = scalar_select %p718, %s33, 1
      %s720 = scalar_lea.vmem %s13, %s719
      %p721 = scmp.lt.s32.totalorder %s33, 1
      %s722 = scalar_select %p721, %s33, 1
      %s723 = scalar_lea.vmem %s14, %s722
      %p724 = scmp.lt.s32.totalorder %s32, 1
      %s725 = scalar_select %p724, %s32, 1
      %s726 = smul.addr %s725, 8
      %s727 = scalar_lea.vmem %s17, %s726
      %p729 = scmp.eq.s32.totalorder %s33, 0
      // Predicated region
      $region89: #{_lambda_.1} parent=87 // pred_check
        %p730 = pneg %p729
      $region90: #{_lambda_.1} parent=87 // pred_check_branch
        %732 = sbr.rel (%p730) target = $region92
      $region91: #{_lambda_.1} parent=87 // pred_region
        %v733 = vld [vmem:[%s684] sm:$0xff]
        %v734 = vld [vmem:[%s1] sm:$0xff]
        %v735 = vadd.f32 %v733, %v734
        %v736 = vld [vmem:[%s3] sm:$0x1]
        %v737 = vld [vmem:[%s4] sm:$0x1]
        %vm738 = vcmask 261120
        %v739 = vsel %vm738, %v735, 0.0
        %740 = vadd.xlane.f32.xlu0 %v739
        %v741 = vpop.xlane.xlu0 %740
        %v742 = vrcp.pop 32.0
        %v743 = vmul.f32 32.0, %v742
        %v744 = vsub.f32 1.0, %v743
        %v745 = vmul.f32 %v742, %v744
        %v746 = vadd.f32 %v742, %v745
        %vm747 = vweird.f32 %v742
        %v748 = vsel %vm747, %v742, %v746
        %v749 = vmul.f32 %v741, %v748
        %v750 = vsub.f32 %v735, %v749
        %v751 = vmul.f32 %v750, %v750
        %v752 = vsel %vm738, %v751, 0.0
        %753 = vadd.xlane.f32.xlu0 %v752
        %v754 = vpop.xlane.xlu0 %753
        %v755 = vmul.f32 %v754, %v748
        %v756 = vadd.f32 %v755, 1e-12
        %v757 = vrsqrt.pop %v756
        %v758 = vmul.f32 %v757, %v756
        %v759 = vmul.f32 %v758, %v757
        %v760 = vmul.f32 0.5, %v759
        %v761 = vsub.f32 1.5, %v760
        %v762 = vmul.f32 %v757, %v761
        %vm763 = vweird.f32 %v756
        %vm764 = vweird.f32 %v757
        %vm765 = vmor %vm763, %vm764
        %v766 = vsel %vm765, %v757, %v762
        %v767 = vmul.f32 %v750, %v766
        %v769 = vperm.slane %v736, 0
        %v771 = vmul.f32 %v767, %v769
        %v773 = vperm.slane %v737, 0
        %v775 = vadd.f32 %v771, %v773
        %776 = vst.msk [vmem:[#allocation2] sm:$0xff] %vm738, %v775
      $region92: #{_lambda_.1} parent=87 // pred_fallthru
        _
      %v777 = vld [vmem:[#allocation2] sm:$0xff]
      %p778 = scmp.eq.s32.totalorder %s33, 1
      %s779 = scalar_select %p778, 2, 0
      %v780 = vlaneseq
      %v781 = vshrl.u32 %v780, 7
      %v782 = vlaneseq
      %v783 = vand.u32 %v782, 127
      %v784 = vld [vmem:[%s687] sm:$0x1]
      %v785 = vstv %s779
      %v786 = vadd.s32 %v781, %v785
      %vm787 = vcmp.le.s32.totalorder %v783, %v786
      %vm788 = vcmp.ne.f32.partialorder %v784, 0.0
      %v789 = vsel %vm788, 1, 0
      %v790 = vperm.slane %v789, 0
      %vm791 = vcmp.eq.s32.totalorder %v790, 1
      %vm792 = vmand %vm787, %vm791
      %v793 = vpack.c.bf16 %v777, %v777
      %v794 = vld [vmem:[%s692] sm:$0xf]
      %v795 = vld [vmem:[%s692 + $0x4] sm:$0xf]
      %v796 = vld [vmem:[%s692 + $0x8] sm:$0xf]
      %v797 = vld [vmem:[%s692 + $0xc] sm:$0xf]
      %v798 = vld [vmem:[%s695] sm:$0x1]
      %v800 = vperm.slane %v798, 0
      %v806 = vunpack.c.l.b16 %v794
      %v807 = vunpack.c.l.b16 %v795
      %v808 = vunpack.c.l.b16 %v796
      %v809 = vunpack.c.l.b16 %v797
      %v810 = vpack.c.b16 %v807, %v806
      %v811 = vpack.c.b16 %v809, %v808
      %vm814 = vcmask 261120
      %v816 = vsel %vm814, %v793, 0
      %818 = vmatpush.bf16.msra.mxu0 0
      %819 = vmatpush.bf16.msra.mxu0 0
      %820 = vmatpush.bf16.msra.mxu0 0
      %821 = vmatpush.bf16.msra.mxu0 0
      %822 = vmatpush.bf16.msra.mxu0 0
      %823 = vmatpush.bf16.msra.mxu0 0
      %824 = vmatpush.bf16.msra.mxu0 %v811
      %825 = vmatpush.bf16.msra.mxu0 %v810
      %826 = vmatmul.bf16.gmra.mxu0 %v816
      %v827 = vpop.f32.mrf.mxu0
      %v828 = vadd.f32 %v800, %v827
      %v829 = vpop.f32.mrf.mxu0
      %830 = vdwg.mxu0
      %832 = vrot.lane.b32.xlu0 %v828, 120
      %v833 = vpop.permute.xlu0 %832
      %835 = vrot.lane.b32.xlu0 %v828, 112
      %v836 = vpop.permute.xlu0 %835
      %838 = vrot.lane.b32.xlu0 %v828, 104
      %v839 = vpop.permute.xlu0 %838
      %v841 = vrot.slane %v836, 4
      %vm842 = vcmask 1047556
      %v843 = vsel %vm842, %v841, %v828
      %v844 = vrot.slane %v828, 4
      %v845 = vsel %vm842, %v836, %v844
      %v847 = vunpack.c.l.s4 1983009808
      %v848 = vunpack.c.0.s8 %v847
      %v849 = vperm.slane %v843, %v848
      %v851 = vunpack.c.l.s4 1983009808
      %v852 = vunpack.c.0.s8 %v851
      %v853 = vperm.slane %v845, %v852
      %v854 = vrot.slane %v839, 4
      %v855 = vsel %vm842, %v854, %v833
      %v856 = vrot.slane %v833, 4
      %v857 = vsel %vm842, %v839, %v856
      %v859 = vunpack.c.l.s4 1983009808
      %v860 = vunpack.c.0.s8 %v859
      %v861 = vperm.slane %v855, %v860
      %v863 = vunpack.c.l.s4 1983009808
      %v864 = vunpack.c.0.s8 %v863
      %v865 = vperm.slane %v857, %v864
      %v866 = vrot.slane %v861, 4
      %v867 = vsel %vm842, %v866, %v849
      %v868 = vrot.slane %v849, 4
      %v869 = vsel %vm842, %v861, %v868
      %v871 = vunpack.c.l.s4 1934713408
      %v872 = vunpack.c.0.s8 %v871
      %v873 = vperm.slane %v867, %v872
      %v875 = vunpack.c.l.s4 1934713408
      %v876 = vunpack.c.0.s8 %v875
      %v877 = vperm.slane %v869, %v876
      %v878 = vrot.slane %v865, 4
      %v879 = vsel %vm842, %v878, %v853
      %v880 = vrot.slane %v853, 4
      %v881 = vsel %vm842, %v865, %v880
      %v883 = vunpack.c.l.s4 1934713408
      %v884 = vunpack.c.0.s8 %v883
      %v885 = vperm.slane %v879, %v884
      %v887 = vunpack.c.l.s4 1934713408
      %v888 = vunpack.c.0.s8 %v887
      %v889 = vperm.slane %v881, %v888
      %v890 = vrot.slane %v873, 4
      %v891 = vsel %vm842, 0.0, %v890
      %v892 = vrot.slane %v877, 4
      %v893 = vsel %vm842, 0.0, %v892
      %v894 = vrot.slane %v885, 4
      %v895 = vsel %vm842, 0.0, %v894
      %v896 = vrot.slane %v889, 4
      %v897 = vsel %vm842, 0.0, %v896
      %v898 = vsel %vm842, %v892, %v873
      %v900 = vunpack.c.l.s4 1983009808
      %v901 = vunpack.c.0.s8 %v900
      %v902 = vperm.slane %v898, %v901
      %v903 = vrot.slane %v893, 4
      %v904 = vsel %vm842, %v903, %v891
      %v906 = vunpack.c.l.s4 1983009808
      %v907 = vunpack.c.0.s8 %v906
      %v908 = vperm.slane %v904, %v907
      %v909 = vsel %vm842, %v896, %v885
      %v911 = vunpack.c.l.s4 1983009808
      %v912 = vunpack.c.0.s8 %v911
      %v913 = vperm.slane %v909, %v912
      %v914 = vrot.slane %v897, 4
      %v915 = vsel %vm842, %v914, %v895
      %v917 = vunpack.c.l.s4 1983009808
      %v918 = vunpack.c.0.s8 %v917
      %v919 = vperm.slane %v915, %v918
      %v920 = vrot.slane %v908, 4
      %v921 = vsel %vm842, %v920, %v902
      %v922 = vrot.slane %v902, 4
      %v923 = vsel %vm842, %v908, %v922
      %v925 = vunpack.c.l.s4 1934713408
      %v926 = vunpack.c.0.s8 %v925
      %v927 = vperm.slane %v921, %v926
      %v929 = vunpack.c.l.s4 1934713408
      %v930 = vunpack.c.0.s8 %v929
      %v931 = vperm.slane %v923, %v930
      %v932 = vrot.slane %v919, 4
      %v933 = vsel %vm842, %v932, %v913
      %v934 = vrot.slane %v913, 4
      %v935 = vsel %vm842, %v919, %v934
      %v937 = vunpack.c.l.s4 1934713408
      %v938 = vunpack.c.0.s8 %v937
      %v939 = vperm.slane %v933, %v938
      %v941 = vunpack.c.l.s4 1934713408
      %v942 = vunpack.c.0.s8 %v941
      %v943 = vperm.slane %v935, %v942
      %v944 = vrot.slane %v939, 4
      %v945 = vsel %vm842, %v944, %v927
      %v946 = vrot.slane %v927, 4
      %v947 = vsel %vm842, %v939, %v946
      %v948 = vrot.slane %v943, 4
      %v949 = vsel %vm842, %v948, %v931
      %v950 = vrot.slane %v931, 4
      %v951 = vsel %vm842, %v943, %v950
      %v952 = vpack.c.bf16 %v945, %v945
      %v953 = vpack.c.bf16 %v947, %v947
      %v954 = vpack.c.bf16 %v949, %v949
      %v955 = vpack.c.bf16 %v951, %v951
      %956 = vrot.lane.b32.xlu0 %v828, 96
      %v957 = vpop.permute.xlu0 %956
      %958 = vrot.lane.b32.xlu0 %v833, 96
      %v959 = vpop.permute.xlu0 %958
      %960 = vrot.lane.b32.xlu0 %v836, 96
      %v961 = vpop.permute.xlu0 %960
      %962 = vrot.lane.b32.xlu0 %v839, 96
      %v963 = vpop.permute.xlu0 %962
      %v968 = vrot.slane %v961, 4
      %v969 = vsel %vm842, %v968, %v957
      %v970 = vrot.slane %v957, 4
      %v971 = vsel %vm842, %v961, %v970
      %v973 = vunpack.c.l.s4 1983009808
      %v974 = vunpack.c.0.s8 %v973
      %v975 = vperm.slane %v969, %v974
      %v977 = vunpack.c.l.s4 1983009808
      %v978 = vunpack.c.0.s8 %v977
      %v979 = vperm.slane %v971, %v978
      %v980 = vrot.slane %v963, 4
      %v981 = vsel %vm842, %v980, %v959
      %v982 = vrot.slane %v959, 4
      %v983 = vsel %vm842, %v963, %v982
      %v985 = vunpack.c.l.s4 1983009808
      %v986 = vunpack.c.0.s8 %v985
      %v987 = vperm.slane %v981, %v986
      %v989 = vunpack.c.l.s4 1983009808
      %v990 = vunpack.c.0.s8 %v989
      %v991 = vperm.slane %v983, %v990
      %v992 = vrot.slane %v987, 4
      %v993 = vsel %vm842, %v992, %v975
      %v994 = vrot.slane %v975, 4
      %v995 = vsel %vm842, %v987, %v994
      %v997 = vunpack.c.l.s4 1934713408
      %v998 = vunpack.c.0.s8 %v997
      %v999 = vperm.slane %v993, %v998
      %v1001 = vunpack.c.l.s4 1934713408
      %v1002 = vunpack.c.0.s8 %v1001
      %v1003 = vperm.slane %v995, %v1002
      %v1004 = vrot.slane %v991, 4
      %v1005 = vsel %vm842, %v1004, %v979
      %v1006 = vrot.slane %v979, 4
      %v1007 = vsel %vm842, %v991, %v1006
      %v1009 = vunpack.c.l.s4 1934713408
      %v1010 = vunpack.c.0.s8 %v1009
      %v1011 = vperm.slane %v1005, %v1010
      %v1013 = vunpack.c.l.s4 1934713408
      %v1014 = vunpack.c.0.s8 %v1013
      %v1015 = vperm.slane %v1007, %v1014
      %v1016 = vrot.slane %v999, 4
      %v1017 = vsel %vm842, 0.0, %v1016
      %v1018 = vrot.slane %v1003, 4
      %v1019 = vsel %vm842, 0.0, %v1018
      %v1020 = vrot.slane %v1011, 4
      %v1021 = vsel %vm842, 0.0, %v1020
      %v1022 = vrot.slane %v1015, 4
      %v1023 = vsel %vm842, 0.0, %v1022
      %v1024 = vsel %vm842, %v1018, %v999
      %v1026 = vunpack.c.l.s4 1983009808
      %v1027 = vunpack.c.0.s8 %v1026
      %v1028 = vperm.slane %v1024, %v1027
      %v1029 = vrot.slane %v1019, 4
      %v1030 = vsel %vm842, %v1029, %v1017
      %v1032 = vunpack.c.l.s4 1983009808
      %v1033 = vunpack.c.0.s8 %v1032
      %v1034 = vperm.slane %v1030, %v1033
      %v1035 = vsel %vm842, %v1022, %v1011
      %v1037 = vunpack.c.l.s4 1983009808
      %v1038 = vunpack.c.0.s8 %v1037
      %v1039 = vperm.slane %v1035, %v1038
      %v1040 = vrot.slane %v1023, 4
      %v1041 = vsel %vm842, %v1040, %v1021
      %v1043 = vunpack.c.l.s4 1983009808
      %v1044 = vunpack.c.0.s8 %v1043
      %v1045 = vperm.slane %v1041, %v1044
      %v1046 = vrot.slane %v1034, 4
      %v1047 = vsel %vm842, %v1046, %v1028
      %v1048 = vrot.slane %v1028, 4
      %v1049 = vsel %vm842, %v1034, %v1048
      %v1051 = vunpack.c.l.s4 1934713408
      %v1052 = vunpack.c.0.s8 %v1051
      %v1053 = vperm.slane %v1047, %v1052
      %v1055 = vunpack.c.l.s4 1934713408
      %v1056 = vunpack.c.0.s8 %v1055
      %v1057 = vperm.slane %v1049, %v1056
      %v1058 = vrot.slane %v1045, 4
      %v1059 = vsel %vm842, %v1058, %v1039
      %v1060 = vrot.slane %v1039, 4
      %v1061 = vsel %vm842, %v1045, %v1060
      %v1063 = vunpack.c.l.s4 1934713408
      %v1064 = vunpack.c.0.s8 %v1063
      %v1065 = vperm.slane %v1059, %v1064
      %v1067 = vunpack.c.l.s4 1934713408
      %v1068 = vunpack.c.0.s8 %v1067
      %v1069 = vperm.slane %v1061, %v1068
      %v1070 = vrot.slane %v1065, 4
      %v1071 = vsel %vm842, %v1070, %v1053
      %v1072 = vrot.slane %v1053, 4
      %v1073 = vsel %vm842, %v1065, %v1072
      %v1074 = vrot.slane %v1069, 4
      %v1075 = vsel %vm842, %v1074, %v1057
      %v1076 = vrot.slane %v1057, 4
      %v1077 = vsel %vm842, %v1069, %v1076
      %v1078 = vpack.c.bf16 %v1071, %v1071
      %v1079 = vpack.c.bf16 %v1073, %v1073
      %v1080 = vpack.c.bf16 %v1075, %v1075
      %v1081 = vpack.c.bf16 %v1077, %v1077
      %1082 = vrot.lane.b32.xlu0 %v828, 64
      %v1083 = vpop.permute.xlu0 %1082
      %1084 = vrot.lane.b32.xlu0 %v833, 64
      %v1085 = vpop.permute.xlu0 %1084
      %1086 = vrot.lane.b32.xlu0 %v836, 64
      %v1087 = vpop.permute.xlu0 %1086
      %1088 = vrot.lane.b32.xlu0 %v839, 64
      %v1089 = vpop.permute.xlu0 %1088
      %v1094 = vrot.slane %v1087, 4
      %v1095 = vsel %vm842, %v1094, %v1083
      %v1096 = vrot.slane %v1083, 4
      %v1097 = vsel %vm842, %v1087, %v1096
      %v1099 = vunpack.c.l.s4 1983009808
      %v1100 = vunpack.c.0.s8 %v1099
      %v1101 = vperm.slane %v1095, %v1100
      %v1103 = vunpack.c.l.s4 1983009808
      %v1104 = vunpack.c.0.s8 %v1103
      %v1105 = vperm.slane %v1097, %v1104
      %v1106 = vrot.slane %v1089, 4
      %v1107 = vsel %vm842, %v1106, %v1085
      %v1108 = vrot.slane %v1085, 4
      %v1109 = vsel %vm842, %v1089, %v1108
      %v1111 = vunpack.c.l.s4 1983009808
      %v1112 = vunpack.c.0.s8 %v1111
      %v1113 = vperm.slane %v1107, %v1112
      %v1115 = vunpack.c.l.s4 1983009808
      %v1116 = vunpack.c.0.s8 %v1115
      %v1117 = vperm.slane %v1109, %v1116
      %v1118 = vrot.slane %v1113, 4
      %v1119 = vsel %vm842, %v1118, %v1101
      %v1120 = vrot.slane %v1101, 4
      %v1121 = vsel %vm842, %v1113, %v1120
      %v1123 = vunpack.c.l.s4 1934713408
      %v1124 = vunpack.c.0.s8 %v1123
      %v1125 = vperm.slane %v1119, %v1124
      %v1127 = vunpack.c.l.s4 1934713408
      %v1128 = vunpack.c.0.s8 %v1127
      %v1129 = vperm.slane %v1121, %v1128
      %v1130 = vrot.slane %v1117, 4
      %v1131 = vsel %vm842, %v1130, %v1105
      %v1132 = vrot.slane %v1105, 4
      %v1133 = vsel %vm842, %v1117, %v1132
      %v1135 = vunpack.c.l.s4 1934713408
      %v1136 = vunpack.c.0.s8 %v1135
      %v1137 = vperm.slane %v1131, %v1136
      %v1139 = vunpack.c.l.s4 1934713408
      %v1140 = vunpack.c.0.s8 %v1139
      %v1141 = vperm.slane %v1133, %v1140
      %v1142 = vrot.slane %v1125, 4
      %v1143 = vsel %vm842, 0.0, %v1142
      %v1144 = vrot.slane %v1129, 4
      %v1145 = vsel %vm842, 0.0, %v1144
      %v1146 = vrot.slane %v1137, 4
      %v1147 = vsel %vm842, 0.0, %v1146
      %v1148 = vrot.slane %v1141, 4
      %v1149 = vsel %vm842, 0.0, %v1148
      %v1150 = vsel %vm842, %v1144, %v1125
      %v1152 = vunpack.c.l.s4 1983009808
      %v1153 = vunpack.c.0.s8 %v1152
      %v1154 = vperm.slane %v1150, %v1153
      %v1155 = vrot.slane %v1145, 4
      %v1156 = vsel %vm842, %v1155, %v1143
      %v1158 = vunpack.c.l.s4 1983009808
      %v1159 = vunpack.c.0.s8 %v1158
      %v1160 = vperm.slane %v1156, %v1159
      %v1161 = vsel %vm842, %v1148, %v1137
      %v1163 = vunpack.c.l.s4 1983009808
      %v1164 = vunpack.c.0.s8 %v1163
      %v1165 = vperm.slane %v1161, %v1164
      %v1166 = vrot.slane %v1149, 4
      %v1167 = vsel %vm842, %v1166, %v1147
      %v1169 = vunpack.c.l.s4 1983009808
      %v1170 = vunpack.c.0.s8 %v1169
      %v1171 = vperm.slane %v1167, %v1170
      %v1172 = vrot.slane %v1160, 4
      %v1173 = vsel %vm842, %v1172, %v1154
      %v1174 = vrot.slane %v1154, 4
      %v1175 = vsel %vm842, %v1160, %v1174
      %v1177 = vunpack.c.l.s4 1934713408
      %v1178 = vunpack.c.0.s8 %v1177
      %v1179 = vperm.slane %v1173, %v1178
      %v1181 = vunpack.c.l.s4 1934713408
      %v1182 = vunpack.c.0.s8 %v1181
      %v1183 = vperm.slane %v1175, %v1182
      %v1184 = vrot.slane %v1171, 4
      %v1185 = vsel %vm842, %v1184, %v1165
      %v1186 = vrot.slane %v1165, 4
      %v1187 = vsel %vm842, %v1171, %v1186
      %v1189 = vunpack.c.l.s4 1934713408
      %v1190 = vunpack.c.0.s8 %v1189
      %v1191 = vperm.slane %v1185, %v1190
      %v1193 = vunpack.c.l.s4 1934713408
      %v1194 = vunpack.c.0.s8 %v1193
      %v1195 = vperm.slane %v1187, %v1194
      %v1196 = vrot.slane %v1191, 4
      %v1197 = vsel %vm842, %v1196, %v1179
      %v1198 = vrot.slane %v1179, 4
      %v1199 = vsel %vm842, %v1191, %v1198
      %v1200 = vrot.slane %v1195, 4
      %v1201 = vsel %vm842, %v1200, %v1183
      %v1202 = vrot.slane %v1183, 4
      %v1203 = vsel %vm842, %v1195, %v1202
      %v1204 = vpack.c.bf16 %v1197, %v1197
      %v1205 = vpack.c.bf16 %v1199, %v1199
      %v1206 = vpack.c.bf16 %v1201, %v1201
      %v1207 = vpack.c.bf16 %v1203, %v1203
      %vm1208 = vcmask 64512
      %v1210 = vsel %vm1208, %v952, 0
      %v1213 = vsel %vm1208, %v1078, 0
      %1215 = vmatpush.bf16.xpose.msra.mxu0 0
      %1216 = vmatpush.bf16.xpose.msra.mxu0 0
      %1217 = vmatpush.bf16.xpose.msra.mxu0 0
      %1218 = vmatpush.bf16.xpose.msra.mxu0 0
      %1219 = vmatpush.bf16.xpose.msra.mxu0 0
      %1220 = vmatpush.bf16.xpose.msra.mxu0 0
      %1221 = vmatpush.bf16.xpose.msra.mxu0 0
      %1222 = vmatpush.bf16.xpose.msra.mxu0 %v1213
      %1223 = vmatmul.bf16.gmra.mxu0 %v1210
      %v1224 = vpop.f32.mrf.mxu0
      %v1225 = vadd.f32 0.0, %v1224
      %v1226 = vpop.f32.mrf.mxu0
      %1227 = vdwg.mxu0
      %v1229 = vsel %vm1208, %v953, 0
      %v1232 = vsel %vm1208, %v1079, 0
      %1234 = vmatpush.bf16.xpose.msra.mxu0 0
      %1235 = vmatpush.bf16.xpose.msra.mxu0 0
      %1236 = vmatpush.bf16.xpose.msra.mxu0 0
      %1237 = vmatpush.bf16.xpose.msra.mxu0 0
      %1238 = vmatpush.bf16.xpose.msra.mxu0 0
      %1239 = vmatpush.bf16.xpose.msra.mxu0 0
      %1240 = vmatpush.bf16.xpose.msra.mxu0 0
      %1241 = vmatpush.bf16.xpose.msra.mxu0 %v1232
      %1242 = vmatmul.bf16.gmra.mxu0 %v1229
      %v1243 = vpop.f32.mrf.mxu0
      %v1244 = vadd.f32 0.0, %v1243
      %v1245 = vpop.f32.mrf.mxu0
      %1246 = vdwg.mxu0
      %v1248 = vsel %vm1208, %v954, 0
      %v1251 = vsel %vm1208, %v1080, 0
      %1253 = vmatpush.bf16.xpose.msra.mxu0 0
      %1254 = vmatpush.bf16.xpose.msra.mxu0 0
      %1255 = vmatpush.bf16.xpose.msra.mxu0 0
      %1256 = vmatpush.bf16.xpose.msra.mxu0 0
      %1257 = vmatpush.bf16.xpose.msra.mxu0 0
      %1258 = vmatpush.bf16.xpose.msra.mxu0 0
      %1259 = vmatpush.bf16.xpose.msra.mxu0 0
      %1260 = vmatpush.bf16.xpose.msra.mxu0 %v1251
      %1261 = vmatmul.bf16.gmra.mxu0 %v1248
      %v1262 = vpop.f32.mrf.mxu0
      %v1263 = vadd.f32 0.0, %v1262
      %v1264 = vpop.f32.mrf.mxu0
      %1265 = vdwg.mxu0
      %v1267 = vsel %vm1208, %v955, 0
      %v1270 = vsel %vm1208, %v1081, 0
      %1272 = vmatpush.bf16.xpose.msra.mxu0 0
      %1273 = vmatpush.bf16.xpose.msra.mxu0 0
      %1274 = vmatpush.bf16.xpose.msra.mxu0 0
      %1275 = vmatpush.bf16.xpose.msra.mxu0 0
      %1276 = vmatpush.bf16.xpose.msra.mxu0 0
      %1277 = vmatpush.bf16.xpose.msra.mxu0 0
      %1278 = vmatpush.bf16.xpose.msra.mxu0 0
      %1279 = vmatpush.bf16.xpose.msra.mxu0 %v1270
      %1280 = vmatmul.bf16.gmra.mxu0 %v1267
      %v1281 = vpop.f32.mrf.mxu0
      %v1282 = vadd.f32 0.0, %v1281
      %v1283 = vpop.f32.mrf.mxu0
      %1284 = vdwg.mxu0
      %v1285 = vsel %vm792, 1, 0
      %vm1286 = vcmp.eq.s32.totalorder %v1285, 1
      %v1287 = vsel %vm1286, %v1225, -1e+20
      %v1288 = vsel %vm1286, %v1244, -1e+20
      %v1289 = vsel %vm1286, %v1263, -1e+20
      %v1290 = vsel %vm1286, %v1282, -1e+20
      %v1291 = vmul.f32 %v1287, 0.35355338
      %v1292 = vmul.f32 %v1288, 0.35355338
      %v1293 = vmul.f32 %v1289, 0.35355338
      %v1294 = vmul.f32 %v1290, 0.35355338
      %v1295 = vsel %vm1208, %v1291, -inf
      %1296 = vmax.xlane.f32.xlu0 %v1295
      %v1297 = vpop.xlane.xlu0 %1296
      %v1298 = vsel %vm1208, %v1292, -inf
      %1299 = vmax.xlane.f32.xlu0 %v1298
      %v1300 = vpop.xlane.xlu0 %1299
      %v1301 = vsel %vm1208, %v1293, -inf
      %1302 = vmax.xlane.f32.xlu0 %v1301
      %v1303 = vpop.xlane.xlu0 %1302
      %v1304 = vsel %vm1208, %v1294, -inf
      %1305 = vmax.xlane.f32.xlu0 %v1304
      %v1306 = vpop.xlane.xlu0 %1305
      %v1307 = vsub.f32 %v1291, %v1297
      %v1308 = vsub.f32 %v1292, %v1300
      %v1309 = vsub.f32 %v1293, %v1303
      %v1310 = vsub.f32 %v1294, %v1306
      %v1311 = vmul.f32 %v1307, 1.442695
      %v1312 = vpow.pop %v1311
      %v1313 = vmul.f32 %v1308, 1.442695
      %v1314 = vpow.pop %v1313
      %v1315 = vmul.f32 %v1309, 1.442695
      %v1316 = vpow.pop %v1315
      %v1317 = vmul.f32 %v1310, 1.442695
      %v1318 = vpow.pop %v1317
      %v1319 = vsel %vm1208, %v1312, 0.0
      %1320 = vadd.xlane.f32.xlu0 %v1319
      %v1321 = vpop.xlane.xlu0 %1320
      %v1322 = vsel %vm1208, %v1314, 0.0
      %1323 = vadd.xlane.f32.xlu0 %v1322
      %v1324 = vpop.xlane.xlu0 %1323
      %v1325 = vsel %vm1208, %v1316, 0.0
      %1326 = vadd.xlane.f32.xlu0 %v1325
      %v1327 = vpop.xlane.xlu0 %1326
      %v1328 = vsel %vm1208, %v1318, 0.0
      %1329 = vadd.xlane.f32.xlu0 %v1328
      %v1330 = vpop.xlane.xlu0 %1329
      %v1331 = vrcp.pop %v1321
      %v1332 = vrcp.pop %v1324
      %v1333 = vrcp.pop %v1327
      %v1334 = vrcp.pop %v1330
      %v1335 = vmul.f32 %v1312, %v1331
      %v1336 = vmul.f32 %v1314, %v1332
      %v1337 = vmul.f32 %v1316, %v1333
      %v1338 = vmul.f32 %v1318, %v1334
      %v1339 = vpack.c.bf16 %v1335, %v1335
      %v1340 = vpack.c.bf16 %v1336, %v1336
      %v1341 = vpack.c.bf16 %v1337, %v1337
      %v1342 = vpack.c.bf16 %v1338, %v1338
      %v1344 = vsel %vm1208, %v1339, 0
      %vm1346 = vcmask 1043456
      %v1348 = vsel %vm1346, %v1204, 0
      %1350 = vmatpush.bf16.msra.mxu0 0
      %1351 = vmatpush.bf16.msra.mxu0 0
      %1352 = vmatpush.bf16.msra.mxu0 0
      %1353 = vmatpush.bf16.msra.mxu0 0
      %1354 = vmatpush.bf16.msra.mxu0 0
      %1355 = vmatpush.bf16.msra.mxu0 0
      %1356 = vmatpush.bf16.msra.mxu0 0
      %1357 = vmatpush.bf16.msra.mxu0 %v1348
      %1358 = vmatmul.bf16.gmra.mxu0 %v1344
      %v1359 = vpop.f32.mrf.mxu0
      %v1360 = vadd.f32 0.0, %v1359
      %v1361 = vpop.f32.mrf.mxu0
      %1362 = vdwg.mxu0
      %v1364 = vsel %vm1208, %v1340, 0
      %v1367 = vsel %vm1346, %v1205, 0
      %1369 = vmatpush.bf16.msra.mxu0 0
      %1370 = vmatpush.bf16.msra.mxu0 0
      %1371 = vmatpush.bf16.msra.mxu0 0
      %1372 = vmatpush.bf16.msra.mxu0 0
      %1373 = vmatpush.bf16.msra.mxu0 0
      %1374 = vmatpush.bf16.msra.mxu0 0
      %1375 = vmatpush.bf16.msra.mxu0 0
      %1376 = vmatpush.bf16.msra.mxu0 %v1367
      %1377 = vmatmul.bf16.gmra.mxu0 %v1364
      %v1378 = vpop.f32.mrf.mxu0
      %v1379 = vadd.f32 0.0, %v1378
      %v1380 = vpop.f32.mrf.mxu0
      %1381 = vdwg.mxu0
      %v1383 = vsel %vm1208, %v1341, 0
      %v1386 = vsel %vm1346, %v1206, 0
      %1388 = vmatpush.bf16.msra.mxu0 0
      %1389 = vmatpush.bf16.msra.mxu0 0
      %1390 = vmatpush.bf16.msra.mxu0 0
      %1391 = vmatpush.bf16.msra.mxu0 0
      %1392 = vmatpush.bf16.msra.mxu0 0
      %1393 = vmatpush.bf16.msra.mxu0 0
      %1394 = vmatpush.bf16.msra.mxu0 0
      %1395 = vmatpush.bf16.msra.mxu0 %v1386
      %1396 = vmatmul.bf16.gmra.mxu0 %v1383
      %v1397 = vpop.f32.mrf.mxu0
      %v1398 = vadd.f32 0.0, %v1397
      %v1399 = vpop.f32.mrf.mxu0
      %1400 = vdwg.mxu0
      %v1402 = vsel %vm1208, %v1342, 0
      %v1405 = vsel %vm1346, %v1207, 0
      %1407 = vmatpush.bf16.msra.mxu0 0
      %1408 = vmatpush.bf16.msra.mxu0 0
      %1409 = vmatpush.bf16.msra.mxu0 0
      %1410 = vmatpush.bf16.msra.mxu0 0
      %1411 = vmatpush.bf16.msra.mxu0 0
      %1412 = vmatpush.bf16.msra.mxu0 0
      %1413 = vmatpush.bf16.msra.mxu0 0
      %1414 = vmatpush.bf16.msra.mxu0 %v1405
      %1415 = vmatmul.bf16.gmra.mxu0 %v1402
      %v1416 = vpop.f32.mrf.mxu0
      %v1417 = vadd.f32 0.0, %v1416
      %v1418 = vpop.f32.mrf.mxu0
      %1419 = vdwg.mxu0
      %v1420 = vrot.slane %v1398, 4
      %v1421 = vsel %vm842, %v1420, %v1360
      %v1422 = vrot.slane %v1360, 4
      %v1423 = vsel %vm842, %v1398, %v1422
      %v1425 = vunpack.c.l.s4 1983009808
      %v1426 = vunpack.c.0.s8 %v1425
      %v1427 = vperm.slane %v1421, %v1426
      %v1429 = vunpack.c.l.s4 1983009808
      %v1430 = vunpack.c.0.s8 %v1429
      %v1431 = vperm.slane %v1423, %v1430
      %v1432 = vrot.slane %v1417, 4
      %v1433 = vsel %vm842, %v1432, %v1379
      %v1434 = vrot.slane %v1379, 4
      %v1435 = vsel %vm842, %v1417, %v1434
      %v1437 = vunpack.c.l.s4 1983009808
      %v1438 = vunpack.c.0.s8 %v1437
      %v1439 = vperm.slane %v1433, %v1438
      %v1441 = vunpack.c.l.s4 1983009808
      %v1442 = vunpack.c.0.s8 %v1441
      %v1443 = vperm.slane %v1435, %v1442
      %v1444 = vrot.slane %v1439, 4
      %v1445 = vsel %vm842, %v1444, %v1427
      %v1446 = vrot.slane %v1427, 4
      %v1447 = vsel %vm842, %v1439, %v1446
      %v1449 = vunpack.c.l.s4 1934713408
      %v1450 = vunpack.c.0.s8 %v1449
      %v1451 = vperm.slane %v1445, %v1450
      %v1453 = vunpack.c.l.s4 1934713408
      %v1454 = vunpack.c.0.s8 %v1453
      %v1455 = vperm.slane %v1447, %v1454
      %v1456 = vrot.slane %v1443, 4
      %v1457 = vsel %vm842, %v1456, %v1431
      %v1458 = vrot.slane %v1431, 4
      %v1459 = vsel %vm842, %v1443, %v1458
      %v1461 = vunpack.c.l.s4 1934713408
      %v1462 = vunpack.c.0.s8 %v1461
      %v1463 = vperm.slane %v1457, %v1462
      %v1465 = vunpack.c.l.s4 1934713408
      %v1466 = vunpack.c.0.s8 %v1465
      %v1467 = vperm.slane %v1459, %v1466
      %v1468 = vrot.slane %v1451, 4
      %v1469 = vsel %vm842, 0.0, %v1468
      %v1470 = vrot.slane %v1455, 4
      %v1471 = vsel %vm842, 0.0, %v1470
      %v1472 = vrot.slane %v1463, 4
      %v1473 = vsel %vm842, 0.0, %v1472
      %v1474 = vrot.slane %v1467, 4
      %v1475 = vsel %vm842, 0.0, %v1474
      %v1476 = vsel %vm842, %v1470, %v1451
      %v1478 = vunpack.c.l.s4 1983009808
      %v1479 = vunpack.c.0.s8 %v1478
      %v1480 = vperm.slane %v1476, %v1479
      %v1481 = vrot.slane %v1471, 4
      %v1482 = vsel %vm842, %v1481, %v1469
      %v1484 = vunpack.c.l.s4 1983009808
      %v1485 = vunpack.c.0.s8 %v1484
      %v1486 = vperm.slane %v1482, %v1485
      %v1487 = vsel %vm842, %v1474, %v1463
      %v1489 = vunpack.c.l.s4 1983009808
      %v1490 = vunpack.c.0.s8 %v1489
      %v1491 = vperm.slane %v1487, %v1490
      %v1492 = vrot.slane %v1475, 4
      %v1493 = vsel %vm842, %v1492, %v1473
      %v1495 = vunpack.c.l.s4 1983009808
      %v1496 = vunpack.c.0.s8 %v1495
      %v1497 = vperm.slane %v1493, %v1496
      %v1498 = vrot.slane %v1486, 4
      %v1499 = vsel %vm842, %v1498, %v1480
      %v1500 = vrot.slane %v1480, 4
      %v1501 = vsel %vm842, %v1486, %v1500
      %v1503 = vunpack.c.l.s4 1934713408
      %v1504 = vunpack.c.0.s8 %v1503
      %v1505 = vperm.slane %v1499, %v1504
      %v1507 = vunpack.c.l.s4 1934713408
      %v1508 = vunpack.c.0.s8 %v1507
      %v1509 = vperm.slane %v1501, %v1508
      %v1510 = vrot.slane %v1497, 4
      %v1511 = vsel %vm842, %v1510, %v1491
      %v1512 = vrot.slane %v1491, 4
      %v1513 = vsel %vm842, %v1497, %v1512
      %v1515 = vunpack.c.l.s4 1934713408
      %v1516 = vunpack.c.0.s8 %v1515
      %v1517 = vperm.slane %v1511, %v1516
      %v1519 = vunpack.c.l.s4 1934713408
      %v1520 = vunpack.c.0.s8 %v1519
      %v1521 = vperm.slane %v1513, %v1520
      %v1522 = vrot.slane %v1517, 4
      %v1523 = vsel %vm842, %v1522, %v1505
      %v1524 = vrot.slane %v1505, 4
      %v1525 = vsel %vm842, %v1517, %v1524
      %v1526 = vrot.slane %v1521, 4
      %v1527 = vsel %vm842, %v1526, %v1509
      %v1528 = vrot.slane %v1509, 4
      %v1529 = vsel %vm842, %v1521, %v1528
      %1531 = vrot.lane.b32.xlu0 %v1525, 8
      %v1532 = vpop.permute.xlu0 %1531
      %1535 = vrot.lane.b32.xlu0 %v1527, 16
      %v1536 = vpop.permute.xlu0 %1535
      %1539 = vrot.lane.b32.xlu0 %v1529, 24
      %v1540 = vpop.permute.xlu0 %1539
      %v1542 = vsel %vm1208, %v1523, %v1532
      %vm1543 = vcmask 130048
      %v1544 = vsel %vm1543, %v1542, %v1536
      %vm1545 = vcmask 195584
      %v1546 = vsel %vm1545, %v1544, %v1540
      %v1547 = vadd.f32 %v777, %v1546
      %v1548 = vld [vmem:[%s714] sm:$0x1]
      %v1549 = vld [vmem:[%s717] sm:$0x1]
      %v1550 = vsel %vm814, %v1547, 0.0
      %1551 = vadd.xlane.f32.xlu0 %v1550
      %v1552 = vpop.xlane.xlu0 %1551
      %v1553 = vrcp.pop 32.0
      %v1554 = vmul.f32 32.0, %v1553
      %v1555 = vsub.f32 1.0, %v1554
      %v1556 = vmul.f32 %v1553, %v1555
      %v1557 = vadd.f32 %v1553, %v1556
      %vm1558 = vweird.f32 %v1553
      %v1559 = vsel %vm1558, %v1553, %v1557
      %v1560 = vmul.f32 %v1552, %v1559
      %v1561 = vsub.f32 %v1547, %v1560
      %v1562 = vmul.f32 %v1561, %v1561
      %v1563 = vsel %vm814, %v1562, 0.0
      %1564 = vadd.xlane.f32.xlu0 %v1563
      %v1565 = vpop.xlane.xlu0 %1564
      %v1566 = vmul.f32 %v1565, %v1559
      %v1567 = vadd.f32 %v1566, 1e-12
      %v1568 = vrsqrt.pop %v1567
      %v1569 = vmul.f32 %v1568, %v1567
      %v1570 = vmul.f32 %v1569, %v1568
      %v1571 = vmul.f32 0.5, %v1570
      %v1572 = vsub.f32 1.5, %v1571
      %v1573 = vmul.f32 %v1568, %v1572
      %vm1574 = vweird.f32 %v1567
      %vm1575 = vweird.f32 %v1568
      %vm1576 = vmor %vm1574, %vm1575
      %v1577 = vsel %vm1576, %v1568, %v1573
      %v1578 = vmul.f32 %v1561, %v1577
      %v1580 = vperm.slane %v1548, 0
      %v1582 = vmul.f32 %v1578, %v1580
      %v1584 = vperm.slane %v1549, 0
      %v1586 = vadd.f32 %v1582, %v1584
      %v1587 = vpack.c.bf16 %v1586, %v1586
      %v1588 = vld [vmem:[%s700] sm:$0xf]
      %v1589 = vld [vmem:[%s700 + $0x4] sm:$0xf]
      %v1590 = vld [vmem:[%s700 + $0x8] sm:$0xf]
      %v1591 = vld [vmem:[%s700 + $0xc] sm:$0xf]
      %v1592 = vld [vmem:[%s703] sm:$0x1]
      %v1594 = vperm.slane %v1592, 0
      %v1600 = vunpack.c.l.b16 %v1588
      %v1601 = vunpack.c.l.b16 %v1589
      %v1602 = vunpack.c.l.b16 %v1590
      %v1603 = vunpack.c.l.b16 %v1591
      %v1604 = vpack.c.b16 %v1601, %v1600
      %v1605 = vpack.c.b16 %v1603, %v1602
      %v1609 = vsel %vm814, %v1587, 0
      %1611 = vmatpush.bf16.msra.mxu0 0
      %1612 = vmatpush.bf16.msra.mxu0 0
      %1613 = vmatpush.bf16.msra.mxu0 0
      %1614 = vmatpush.bf16.msra.mxu0 0
      %1615 = vmatpush.bf16.msra.mxu0 0
      %1616 = vmatpush.bf16.msra.mxu0 0
      %1617 = vmatpush.bf16.msra.mxu0 %v1605
      %1618 = vmatpush.bf16.msra.mxu0 %v1604
      %1619 = vmatmul.bf16.gmra.mxu0 %v1609
      %v1620 = vpop.f32.mrf.mxu0
      %v1621 = vadd.f32 %v1594, %v1620
      %v1622 = vpop.f32.mrf.mxu0
      %1623 = vdwg.mxu0
      %v1624 = vmul.f32 %v1621, 0.5
      %v1625 = vmul.f32 %v1621, 0.70710677
      %v1626 = vmul.f32 %v1625, %v1625
      %v1627 = vmin.f32 16.0, %v1626
      %v1628 = vmul.f32 %v1627, 2.1237322e-06
      %v1629 = vadd.f32 %v1628, 0.00028619796
      %v1630 = vmul.f32 %v1627, %v1629
      %v1631 = vadd.f32 %v1630, 0.0036580483
      %v1632 = vmul.f32 %v1627, %v1631
      %v1633 = vadd.f32 %v1632, 0.05243302
      %v1634 = vmul.f32 %v1627, %v1633
      %v1635 = vadd.f32 %v1634, 0.18741608
      %v1636 = vmul.f32 %v1627, %v1635
      %v1637 = vadd.f32 %v1636, 1.1283791
      %v1638 = vmul.f32 %v1625, %v1637
      %v1639 = vmul.f32 %v1627, 3.8918573e-05
      %v1640 = vadd.f32 %v1639, 0.001143296
      %v1641 = vmul.f32 %v1627, %v1640
      %v1642 = vadd.f32 %v1641, 0.014752088
      %v1643 = vmul.f32 %v1627, %v1642
      %v1644 = vadd.f32 %v1643, 0.112945676
      %v1645 = vmul.f32 %v1627, %v1644
      %v1646 = vadd.f32 %v1645, 0.4994258
      %v1647 = vmul.f32 %v1627, %v1646
      %v1648 = vadd.f32 %v1647, 1.0
      %v1649 = vrcp.pop %v1648
      %v1650 = vmul.f32 %v1648, %v1649
      %v1651 = vsub.f32 1.0, %v1650
      %v1652 = vmul.f32 %v1649, %v1651
      %v1653 = vadd.f32 %v1649, %v1652
      %vm1654 = vweird.f32 %v1648
      %vm1655 = vweird.f32 %v1649
      %vm1656 = vmor %vm1654, %vm1655
      %v1657 = vsel %vm1656, %v1649, %v1653
      %v1658 = vand.u32 2147483647, %v1648
      %vm1659 = vcmp.eq.f32.partialorder %v1658, 8.507059e+37
      %v1660 = vand.u32 %v1648, 2147483648
      %v1661 = vor.u32 1.1754944e-38, %v1660
      %v1662 = vsel %vm1659, %v1661, %v1657
      %v1663 = vmul.f32 %v1638, %v1662
      %v1664 = vmin.f32 %v1663, 1.0
      %v1665 = vmax.f32 %v1664, -1.0
      %v1666 = vadd.f32 %v1665, 1.0
      %v1667 = vmul.f32 %v1624, %v1666
      %v1668 = vpack.c.bf16 %v1667, %v1667
      %v1669 = vld [vmem:[%s708] sm:$0xf]
      %v1670 = vld [vmem:[%s708 + $0x4] sm:$0xf]
      %v1671 = vld [vmem:[%s708 + $0x8] sm:$0xf]
      %v1672 = vld [vmem:[%s708 + $0xc] sm:$0xf]
      %v1673 = vld [vmem:[%s708 + $0x10] sm:$0xf]
      %v1674 = vld [vmem:[%s708 + $0x14] sm:$0xf]
      %v1675 = vld [vmem:[%s708 + $0x18] sm:$0xf]
      %v1676 = vld [vmem:[%s708 + $0x1c] sm:$0xf]
      %v1677 = vld [vmem:[%s711] sm:$0x1]
      %v1679 = vperm.slane %v1677, 0
      %v1689 = vunpack.c.l.b16 %v1669
      %v1690 = vunpack.c.l.b16 %v1670
      %v1691 = vunpack.c.l.b16 %v1671
      %v1692 = vunpack.c.l.b16 %v1672
      %v1693 = vunpack.c.l.b16 %v1673
      %v1694 = vunpack.c.l.b16 %v1674
      %v1695 = vunpack.c.l.b16 %v1675
      %v1696 = vunpack.c.l.b16 %v1676
      %v1697 = vpack.c.b16 %v1690, %v1689
      %v1698 = vpack.c.b16 %v1692, %v1691
      %v1699 = vpack.c.b16 %v1694, %v1693
      %v1700 = vpack.c.b16 %v1696, %v1695
      %vm1705 = vcmask 523264
      %v1707 = vsel %vm1705, %v1668, 0
      %1709 = vmatpush.bf16.msra.mxu0 0
      %1710 = vmatpush.bf16.msra.mxu0 0
      %1711 = vmatpush.bf16.msra.mxu0 0
      %1712 = vmatpush.bf16.msra.mxu0 0
      %1713 = vmatpush.bf16.msra.mxu0 %v1700
      %1714 = vmatpush.bf16.msra.mxu0 %v1699
      %1715 = vmatpush.bf16.msra.mxu0 %v1698
      %1716 = vmatpush.bf16.msra.mxu0 %v1697
      %1717 = vmatmul.bf16.gmra.mxu0 %v1707
      %v1718 = vpop.f32.mrf.mxu0
      %v1719 = vadd.f32 %v1679, %v1718
      %v1720 = vpop.f32.mrf.mxu0
      %1721 = vdwg.mxu0
      %v1722 = vadd.f32 %v1586, %v1719
      %v1723 = vld [vmem:[%s720] sm:$0x1]
      %v1724 = vld [vmem:[%s723] sm:$0x1]
      %v1725 = vsel %vm814, %v1722, 0.0
      %1726 = vadd.xlane.f32.xlu0 %v1725
      %v1727 = vpop.xlane.xlu0 %1726
      %v1728 = vmul.f32 %v1727, %v1559
      %v1729 = vsub.f32 %v1722, %v1728
      %v1730 = vmul.f32 %v1729, %v1729
      %v1731 = vsel %vm814, %v1730, 0.0
      %1732 = vadd.xlane.f32.xlu0 %v1731
      %v1733 = vpop.xlane.xlu0 %1732
      %v1734 = vmul.f32 %v1733, %v1559
      %v1735 = vadd.f32 %v1734, 1e-12
      %v1736 = vrsqrt.pop %v1735
      %v1737 = vmul.f32 %v1736, %v1735
      %v1738 = vmul.f32 %v1737, %v1736
      %v1739 = vmul.f32 0.5, %v1738
      %v1740 = vsub.f32 1.5, %v1739
      %v1741 = vmul.f32 %v1736, %v1740
      %vm1742 = vweird.f32 %v1735
      %vm1743 = vweird.f32 %v1736
      %vm1744 = vmor %vm1742, %vm1743
      %v1745 = vsel %vm1744, %v1736, %v1741
      %v1746 = vmul.f32 %v1729, %v1745
      %v1748 = vperm.slane %v1723, 0
      %v1750 = vmul.f32 %v1746, %v1748
      %v1752 = vperm.slane %v1724, 0
      %v1754 = vadd.f32 %v1750, %v1752
      %1755 = vst.msk [vmem:[#allocation2] sm:$0xff] %vm814, %v1754
      // Predicated region
      $region93: #{_lambda_.1} parent=87 // pred_check
        %p1756 = pneg %p778
      $region94: #{_lambda_.1} parent=87 // pred_check_branch
        %1758 = sbr.rel (%p1756) target = $region96
      $region95: #{_lambda_.1} parent=87 // pred_region
        %v1759 = vpack.c.bf16 %v1754, %v1754
        %v1760 = vld [vmem:[%s15] sm:$0xf]
        %v1761 = vld [vmem:[%s15 + $0x4] sm:$0xf]
        %v1762 = vld [vmem:[%s15 + $0x8] sm:$0xf]
        %v1763 = vld [vmem:[%s15 + $0xc] sm:$0xf]
        %v1764 = vld [vmem:[%s16] sm:$0x1]
        %v1766 = vperm.slane %v1764, 0
        %v1772 = vunpack.c.l.b16 %v1760
        %v1773 = vunpack.c.l.b16 %v1761
        %v1774 = vunpack.c.l.b16 %v1762
        %v1775 = vunpack.c.l.b16 %v1763
        %v1776 = vpack.c.b16 %v1773, %v1772
        %v1777 = vpack.c.b16 %v1775, %v1774
        %v1781 = vsel %vm814, %v1759, 0
        %1783 = vmatpush.bf16.msra.mxu0 0
        %1784 = vmatpush.bf16.msra.mxu0 0
        %1785 = vmatpush.bf16.msra.mxu0 0
        %1786 = vmatpush.bf16.msra.mxu0 0
        %1787 = vmatpush.bf16.msra.mxu0 0
        %1788 = vmatpush.bf16.msra.mxu0 0
        %1789 = vmatpush.bf16.msra.mxu0 %v1777
        %1790 = vmatpush.bf16.msra.mxu0 %v1776
        %1791 = vmatmul.bf16.gmra.mxu0 %v1781
        %v1792 = vpop.f32.mrf.mxu0
        %v1793 = vadd.f32 %v1766, %v1792
        %v1794 = vpop.f32.mrf.mxu0
        %1795 = vdwg.mxu0
        %1796 = vst [vmem:[%s727] sm:$0xff] %v1793
      $region96: #{_lambda_.1} parent=87 // pred_fallthru
        _
      %p1797 = scmp.lt.s32.totalorder %s32, 1
      %s1798 = scalar_select %p1797, %s32, 1
      %s1799 = smul.addr %s1798, 8
      %s1800 = scalar_lea.vmem %s17, %s1799
      // Predicated region
      $region97: #{_lambda_.1} parent=87 // pred_check
        %p1801 = pneg %p475
      $region98: #{_lambda_.1} parent=87 // pred_check_branch
        %1803 = sbr.rel (%p1801) target = $region100
      $region99: #{_lambda_.1} parent=87 // pred_region
        _
      $region100: #{_lambda_.1} parent=87 // pred_fallthru
        _
    $region88: #{_lambda_.1} parent=5 // pred_fallthru
      _
    %p1804 = scmp.le.s32.totalorder 2, %s23
    // Predicated region
    $region101: #{_lambda_.1} parent=5 // pred_check
      %p1805 = pneg %p1804
    $region102: #{_lambda_.1} parent=5 // pred_check_branch
      %1807 = sbr.rel (%p1805) target = $region104
    $region103: #{_lambda_.1} parent=5 // pred_region
      %s1808 = ssub.s32 %s23, 2
      // Predicated region
      $region105: #{_lambda_.1} parent=103 // pred_check
        %p1809 = pneg %p481
      $region106: #{_lambda_.1} parent=103 // pred_check_branch
        %1811 = sbr.rel (%p1809) target = $region108
      $region107: #{_lambda_.1} parent=103 // pred_region
        %p1812 = scmp.lt.s32.totalorder %s34, 1
        %s1813 = scalar_select %p1812, %s34, 1
        %s1814 = smul.addr %s1813, 8
        %s1815 = scalar_lea.vmem %s17, %s1814
      $region108: #{_lambda_.1} parent=103 // pred_fallthru
        _
    $region104: #{_lambda_.1} parent=5 // pred_fallthru
      _
  $region6: #{_lambda_.1} parent=0 // loop_footer
    %s27 = sadd.s32 1, %s23
  $region7: #{_lambda_.1} parent=0 // loop_footer_branch
    %22 = sbr.rel target = $region3
  $region8: #{_lambda_.1} parent=0 // loop_exit
    _

</llo_original>
